<compile_context>
chip_gen: v7x
topology: tpu7x:2x2x1
jax: 0.10.0
libtpu: 0.0.40
codegen_flags: <defaults>
</compile_context>

<pallas_src>
import functools

import jax
import jax.numpy as jnp
from jax.experimental import pallas as pl
from jax.experimental.pallas import tpu as pltpu

EPS = 1e-5            # PyTorch BatchNorm1d default eps
N_BLOCK_ARGS = 8      # w1_ext, b1_ext, g1, be1, w2, b2, g2, be2
N_ATTN_ARGS = 8       # wl, bl, wg, bg, fc1_w, fc1_b, fc2_w, fc2_b


def _vmem_spec():
    return pl.BlockSpec(memory_space=pltpu.MemorySpace.VMEM)


# ------------------------------ fused kernel ------------------------------

def fused_forward_kernel(*refs, batch, seqlen):
    # refs = [x2d, mask_not_first, mask_not_last] + 3*8 block params
    #        + 8 attention params + [out]
    x_ref, mnf_ref, mnl_ref = refs[0], refs[1], refs[2]
    blk_refs = [refs[3 + N_BLOCK_ARGS * i: 3 + N_BLOCK_ARGS * (i + 1)]
                for i in range(3)]
    attn_base = 3 + 3 * N_BLOCK_ARGS
    (wl_ref, bl_ref, wg_ref, bg_ref,
     fw1_ref, fb1_ref, fw2_ref, fb2_ref) = refs[attn_base:attn_base + N_ATTN_ARGS]
    o_ref = refs[-1]

    nrows = batch * seqlen
    mnf = mnf_ref[...]          # (B*L, 1): 1.0 except on rows with l == 0
    mnl = mnl_ref[...]          # (B*L, 1): 1.0 except on rows with l == L-1

    def im2col(h):
        """(B*L, C) -> (B*L, 3C) halo taps [x[l-1], x[l], x[l+1]], zero at ends."""
        left = pltpu.roll(h, shift=1, axis=0) * mnf            # x[l-1]
        right = pltpu.roll(h, shift=nrows - 1, axis=0) * mnl   # x[l+1]
        return jnp.concatenate([left, h, right], axis=-1)

    def bn(h, g_ref_, be_ref_):
        """Training-mode BatchNorm over batch*length, folded scale/shift."""
        inv_n = 1.0 / h.shape[0]
        mean = jnp.sum(h, axis=0, keepdims=True) * inv_n
        var = jnp.sum(h * h, axis=0, keepdims=True) * inv_n - mean * mean
        scale = g_ref_[...] * jax.lax.rsqrt(jnp.maximum(var, 0.0) + EPS)
        return h * scale + (be_ref_[...] - mean * scale)

    def res_block(h_in, prefs):
        w1e_ref, b1e_ref, g1_ref, be1_ref, w2_ref, b2_ref, g2_ref, be2_ref = prefs
        cout = w2_ref.shape[1]
        # One MXU matmul produces BOTH the conv1 pre-activation (cols :cout)
        # and the 1x1-downsample residual path (cols cout:).
        both = jnp.dot(im2col(h_in), w1e_ref[...],
                       preferred_element_type=jnp.float32) + b1e_ref[...]
        h_pre, res = both[:, :cout], both[:, cout:]
        h = jnp.maximum(bn(h_pre, g1_ref, be1_ref), 0.0)
        h2 = bn(jnp.dot(im2col(h), w2_ref[...],
                        preferred_element_type=jnp.float32) + b2_ref[...],
                g2_ref, be2_ref)
        return jnp.maximum(h2 + res, 0.0)

    # ------------------ residual tower (channels-last, flattened) ------------------
    x = x_ref[...]                                   # (B*L, C0)
    for prefs in blk_refs:
        x = res_block(x, prefs)
    c = x.shape[-1]

    # ------------------ attention head ------------------
    # One batched minor-dim transpose, then one (B*C, L) @ (L, L) matmul with
    # length on the lane axis -> softmax / pooling are lane reductions.
    x_bcl = jnp.transpose(x.reshape(batch, seqlen, c), (0, 2, 1))    # (B, C, L)
    x_cl = x_bcl.reshape(batch * c, seqlen)                          # (B*C, L)
    y = jnp.dot(x_cl, wl_ref[...],
                preferred_element_type=jnp.float32) + bl_ref[...]    # (B*C, L)
    e = jnp.exp(y - jnp.max(y, axis=-1, keepdims=True))
    lw = e * pl.reciprocal(jnp.sum(e, axis=-1, keepdims=True), approx=True)
    xw = (x_cl * lw).reshape(batch, c, seqlen)                       # (B, C, L)

    pooled = jnp.sum(xw, axis=-1) * (1.0 / seqlen)                   # (B, C)
    g = jnp.dot(pooled, wg_ref[...],
                preferred_element_type=jnp.float32) + bg_ref[...]
    ge = jnp.exp(g - jnp.max(g, axis=-1, keepdims=True))
    gw = ge * pl.reciprocal(jnp.sum(ge, axis=-1, keepdims=True), approx=True)

    feat = jnp.sum(xw * gw[:, :, None], axis=-1)                     # (B, C)
    h1 = jnp.maximum(jnp.dot(feat, fw1_ref[...],
                             preferred_element_type=jnp.float32) + fb1_ref[...], 0.0)
    o_ref[...] = jnp.dot(h1, fw2_ref[...],
                         preferred_element_type=jnp.float32) + fb2_ref[...]


# ------------------------------- glue / model -------------------------------

def _prep_block(p):
    """Pack one ResidualBlock's params into im2col-kernel layout."""
    cout, cin, _ = p["w1"].shape
    row = lambda v: v.reshape(1, -1)
    # (Cout, Cin, 3) -> (3*Cin, Cout); row = tap*Cin + ci, matching the im2col LHS.
    w1_col = jnp.transpose(p["w1"], (2, 1, 0)).reshape(3 * cin, cout)
    # 1x1 downsample folded onto the N axis (active only on the center-tap rows).
    wd_ext = jnp.zeros((3 * cin, cout), jnp.float32).at[cin:2 * cin, :].set(
        p["wd"][:, :, 0].T)
    w1_ext = jnp.concatenate([w1_col, wd_ext], axis=1)              # (3*Cin, 2*Cout)
    b1_ext = jnp.concatenate([p["b1"], p["bd"]]).reshape(1, -1)     # (1, 2*Cout)
    w2_col = jnp.transpose(p["w2"], (2, 1, 0)).reshape(3 * cout, cout)
    return [w1_ext, b1_ext, row(p["g1"]), row(p["be1"]),
            w2_col, row(p["b2"]), row(p["g2"]), row(p["be2"])]


def cnn_residual_attention(x_ncl, params):
    # x_ncl: (B, feature_size, L), exactly like the PyTorch module input.
    x = jnp.transpose(x_ncl, (0, 2, 1)).astype(jnp.float32)          # (B, L, C0)
    B, L, C0 = x.shape
    x2 = x.reshape(B * L, C0)

    # Boundary masks for the +-1 conv taps (zero-padding at l=0 / l=L-1 and at
    # batch boundaries of the fused (B*L) axis).  Computed once, reused by all
    # six convs inside the kernel.
    pos = jnp.tile(jnp.arange(L, dtype=jnp.int32), B)
    mnf = (pos != 0).astype(jnp.float32).reshape(B * L, 1)
    mnl = (pos != L - 1).astype(jnp.float32).reshape(B * L, 1)

    out_size = params["fc2_w"].shape[0]
    row = lambda v: v.reshape(1, -1)

    args = ([x2, mnf, mnl]
            + _prep_block(params["rb1"])
            + _prep_block(params["rb2"])
            + _prep_block(params["rb3"])
            + [params["attn_local_w"].T, row(params["attn_local_b"]),
               params["attn_global_w"].T, row(params["attn_global_b"]),
               params["fc1_w"].T, row(params["fc1_b"]),
               params["fc2_w"].T, row(params["fc2_b"])])

    kernel = functools.partial(fused_forward_kernel, batch=B, seqlen=L)
    # TODO(synk): at the real config (L=888, large B) add a batch-tile grid with
    # dimension_semantics=("parallel",) plus a cross-tile BN-stats pass so the
    # working set fits 64 MiB VMEM on v7x and both TensorCores are used.
    return pl.pallas_call(
        kernel,
        out_shape=jax.ShapeDtypeStruct((B, out_size), jnp.float32),
        in_specs=[_vmem_spec() for _ in args],
        out_specs=_vmem_spec(),
    )(*args)


# --------------------------- pure-JAX reference ---------------------------

def _conv1d_ref(x, w, b, pad):
    y = jax.lax.conv_general_dilated(
        x, w, window_strides=(1,), padding=[(pad, pad)],
        dimension_numbers=("NCH", "OIH", "NCH"))
    return y + b[None, :, None]


def _bn_ref(x, g, be):
    mean = x.mean(axis=(0, 2), keepdims=True)
    var = ((x - mean) ** 2).mean(axis=(0, 2), keepdims=True)
    return (x - mean) / jnp.sqrt(var + EPS) * g[None, :, None] + be[None, :, None]


def _res_block_ref(x, p):
    h = jax.nn.relu(_bn_ref(_conv1d_ref(x, p["w1"], p["b1"], 1), p["g1"], p["be1"]))
    h = _bn_ref(_conv1d_ref(h, p["w2"], p["b2"], 1), p["g2"], p["be2"])
    res = _conv1d_ref(x, p["wd"], p["bd"], 0)
    return jax.nn.relu(h + res)


def model_ref(x, params):
    x = _res_block_ref(x, params["rb1"])
    x = _res_block_ref(x, params["rb2"])
    x = _res_block_ref(x, params["rb3"])
    y = jnp.einsum("bcl,ml->bcm", x, params["attn_local_w"]) + params["attn_local_b"]
    lw = jax.nn.softmax(y, axis=2)
    x = x * lw
    gw = jax.nn.softmax(x.mean(axis=2) @ params["attn_global_w"].T
                        + params["attn_global_b"], axis=1)[:, :, None]
    x = (x * gw).sum(axis=2)
    h = jax.nn.relu(x @ params["fc1_w"].T + params["fc1_b"])
    return h @ params["fc2_w"].T + params["fc2_b"]


# ----------------------------- deterministic init -----------------------------

def init_params(key, feature_size, out_channels, output_size, seq_len):
    keys = iter(jax.random.split(key, 64))

    def nrm(shape, scale=0.1):
        return scale * jax.random.normal(next(keys), shape, jnp.float32)

    def res_block_params(cin, cout):
        return dict(
            w1=nrm((cout, cin, 3)), b1=nrm((cout,)),
            g1=1.0 + nrm((cout,)), be1=nrm((cout,)),
            w2=nrm((cout, cout, 3)), b2=nrm((cout,)),
            g2=1.0 + nrm((cout,)), be2=nrm((cout,)),
            wd=nrm((cout, cin, 1)), bd=nrm((cout,)),
        )

    c0, c1, c2 = out_channels
    return dict(
        rb1=res_block_params(feature_size, c0),
        rb2=res_block_params(c0, c1),
        rb3=res_block_params(c1, c2),
        attn_local_w=nrm((seq_len, seq_len)), attn_local_b=nrm((seq_len,)),
        attn_global_w=nrm((c2, c2)), attn_global_b=nrm((c2,)),
        fc1_w=nrm((256, c2)), fc1_b=nrm((256,)),
        fc2_w=nrm((output_size, 256)), fc2_b=nrm((output_size,)),
    )


if __name__ == "__main__":
    B, feature_size, L = 2, 4, 16
    out_channels = (8, 16, 32)
    output_size = 5

    key = jax.random.PRNGKey(0)
    pkey, xkey = jax.random.split(key)
    params = init_params(pkey, feature_size, out_channels, output_size, L)
    x = jax.random.normal(xkey, (B, feature_size, L), jnp.float32)  # NCL input

    y = jax.jit(cnn_residual_attention)(x, params)
    y = jax.block_until_ready(y)
    assert y.shape == (B, output_size)

    y_ref = model_ref(x, params)
    assert jnp.allclose(y, y_ref, atol=2e-2, rtol=2e-2), (y, y_ref)
    print("KERNEL_OK")
</pallas_src>

<mosaic_0001>
module attributes {stable_mosaic.version = 11 : i64} {
  func.func @fused_forward_kernel(%arg0: memref<32x4xf32, #tpu.memory_space<vmem>>, %arg1: memref<32x1xf32, #tpu.memory_space<vmem>>, %arg2: memref<32x1xf32, #tpu.memory_space<vmem>>, %arg3: memref<12x16xf32, #tpu.memory_space<vmem>>, %arg4: memref<1x16xf32, #tpu.memory_space<vmem>>, %arg5: memref<1x8xf32, #tpu.memory_space<vmem>>, %arg6: memref<1x8xf32, #tpu.memory_space<vmem>>, %arg7: memref<24x8xf32, #tpu.memory_space<vmem>>, %arg8: memref<1x8xf32, #tpu.memory_space<vmem>>, %arg9: memref<1x8xf32, #tpu.memory_space<vmem>>, %arg10: memref<1x8xf32, #tpu.memory_space<vmem>>, %arg11: memref<24x32xf32, #tpu.memory_space<vmem>>, %arg12: memref<1x32xf32, #tpu.memory_space<vmem>>, %arg13: memref<1x16xf32, #tpu.memory_space<vmem>>, %arg14: memref<1x16xf32, #tpu.memory_space<vmem>>, %arg15: memref<48x16xf32, #tpu.memory_space<vmem>>, %arg16: memref<1x16xf32, #tpu.memory_space<vmem>>, %arg17: memref<1x16xf32, #tpu.memory_space<vmem>>, %arg18: memref<1x16xf32, #tpu.memory_space<vmem>>, %arg19: memref<48x64xf32, #tpu.memory_space<vmem>>, %arg20: memref<1x64xf32, #tpu.memory_space<vmem>>, %arg21: memref<1x32xf32, #tpu.memory_space<vmem>>, %arg22: memref<1x32xf32, #tpu.memory_space<vmem>>, %arg23: memref<96x32xf32, #tpu.memory_space<vmem>>, %arg24: memref<1x32xf32, #tpu.memory_space<vmem>>, %arg25: memref<1x32xf32, #tpu.memory_space<vmem>>, %arg26: memref<1x32xf32, #tpu.memory_space<vmem>>, %arg27: memref<16x16xf32, #tpu.memory_space<vmem>>, %arg28: memref<1x16xf32, #tpu.memory_space<vmem>>, %arg29: memref<32x32xf32, #tpu.memory_space<vmem>>, %arg30: memref<1x32xf32, #tpu.memory_space<vmem>>, %arg31: memref<32x256xf32, #tpu.memory_space<vmem>>, %arg32: memref<1x256xf32, #tpu.memory_space<vmem>>, %arg33: memref<256x5xf32, #tpu.memory_space<vmem>>, %arg34: memref<1x5xf32, #tpu.memory_space<vmem>>, %arg35: memref<2x5xf32, #tpu.memory_space<vmem>>) attributes {dimension_semantics = [], scalar_prefetch = 0 : i64, scratch_operands = 0 : i64, tpu.core_type = #tpu.core_type<tc>} {
    %c0 = arith.constant 0 : index
    %c0_0 = arith.constant 0 : index
    %0 = vector.load %arg1[%c0, %c0_0] : memref<32x1xf32, #tpu.memory_space<vmem>>, vector<32x1xf32>
    %c0_1 = arith.constant 0 : index
    %c0_2 = arith.constant 0 : index
    %1 = vector.load %arg2[%c0_1, %c0_2] : memref<32x1xf32, #tpu.memory_space<vmem>>, vector<32x1xf32>
    %c0_3 = arith.constant 0 : index
    %c0_4 = arith.constant 0 : index
    %2 = vector.load %arg0[%c0_3, %c0_4] : memref<32x4xf32, #tpu.memory_space<vmem>>, vector<32x4xf32>
    %c1_i32 = arith.constant 1 : i32
    %3 = tpu.dynamic_rotate %2 by %c1_i32 dim 0 : vector<32x4xf32>, i32 -> vector<32x4xf32>
    %4 = vector.broadcast %0 : vector<32x1xf32> to vector<32x4xf32>
    %5 = arith.mulf %3, %4 : vector<32x4xf32>
    %c31_i32 = arith.constant 31 : i32
    %6 = tpu.dynamic_rotate %2 by %c31_i32 dim 0 : vector<32x4xf32>, i32 -> vector<32x4xf32>
    %7 = vector.broadcast %1 : vector<32x1xf32> to vector<32x4xf32>
    %8 = arith.mulf %6, %7 : vector<32x4xf32>
    %9 = tpu.concatenate %5, %2, %8 in 1 : vector<32x4xf32>, vector<32x4xf32>, vector<32x4xf32> -> vector<32x12xf32>
    %c0_5 = arith.constant 0 : index
    %c0_6 = arith.constant 0 : index
    %10 = vector.load %arg3[%c0_5, %c0_6] : memref<12x16xf32, #tpu.memory_space<vmem>>, vector<12x16xf32>
    %cst = arith.constant dense<0.000000e+00> : vector<32x16xf32>
    %11 = tpu.matmul %9, %10, %cst {dimension_numbers = #tpu.dot_dimension_numbers<[1], [0], [0], [1], [0, 0, 1, 1], [], []>} : vector<32x12xf32>, vector<12x16xf32>, vector<32x16xf32> -> vector<32x16xf32>
    %c0_7 = arith.constant 0 : index
    %c0_8 = arith.constant 0 : index
    %12 = vector.load %arg4[%c0_7, %c0_8] : memref<1x16xf32, #tpu.memory_space<vmem>>, vector<1x16xf32>
    %13 = vector.broadcast %12 : vector<1x16xf32> to vector<32x16xf32>
    %14 = arith.addf %11, %13 : vector<32x16xf32>
    %15 = vector.extract_strided_slice %14 {offsets = [0, 0], sizes = [32, 8], strides = [1, 1]} : vector<32x16xf32> to vector<32x8xf32>
    %16 = vector.extract_strided_slice %14 {offsets = [0, 8], sizes = [32, 8], strides = [1, 1]} : vector<32x16xf32> to vector<32x8xf32>
    %cst_9 = arith.constant dense<0.000000e+00> : vector<8xf32>
    %17 = vector.multi_reduction <add>, %15, %cst_9 [0] : vector<32x8xf32> to vector<8xf32>
    %18 = vector.shape_cast %17 : vector<8xf32> to vector<1x8xf32>
    %cst_10 = arith.constant 3.125000e-02 : f32
    %19 = vector.broadcast %cst_10 : f32 to vector<1x8xf32>
    %20 = arith.mulf %18, %19 : vector<1x8xf32>
    %21 = arith.mulf %15, %15 : vector<32x8xf32>
    %cst_11 = arith.constant dense<0.000000e+00> : vector<8xf32>
    %22 = vector.multi_reduction <add>, %21, %cst_11 [0] : vector<32x8xf32> to vector<8xf32>
    %23 = vector.shape_cast %22 : vector<8xf32> to vector<1x8xf32>
    %cst_12 = arith.constant 3.125000e-02 : f32
    %24 = vector.broadcast %cst_12 : f32 to vector<1x8xf32>
    %25 = arith.mulf %23, %24 : vector<1x8xf32>
    %26 = arith.mulf %20, %20 : vector<1x8xf32>
    %27 = arith.subf %25, %26 : vector<1x8xf32>
    %c0_13 = arith.constant 0 : index
    %c0_14 = arith.constant 0 : index
    %28 = vector.load %arg5[%c0_13, %c0_14] : memref<1x8xf32, #tpu.memory_space<vmem>>, vector<1x8xf32>
    %cst_15 = arith.constant 0.000000e+00 : f32
    %29 = vector.broadcast %cst_15 : f32 to vector<1x8xf32>
    %30 = arith.maximumf %27, %29 : vector<1x8xf32>
    %cst_16 = arith.constant 9.99999974E-6 : f32
    %31 = vector.broadcast %cst_16 : f32 to vector<1x8xf32>
    %32 = arith.addf %30, %31 : vector<1x8xf32>
    %33 = math.rsqrt %32 : vector<1x8xf32>
    %34 = arith.mulf %28, %33 : vector<1x8xf32>
    %35 = vector.broadcast %34 : vector<1x8xf32> to vector<32x8xf32>
    %36 = arith.mulf %15, %35 : vector<32x8xf32>
    %c0_17 = arith.constant 0 : index
    %c0_18 = arith.constant 0 : index
    %37 = vector.load %arg6[%c0_17, %c0_18] : memref<1x8xf32, #tpu.memory_space<vmem>>, vector<1x8xf32>
    %38 = arith.mulf %20, %34 : vector<1x8xf32>
    %39 = arith.subf %37, %38 : vector<1x8xf32>
    %40 = vector.broadcast %39 : vector<1x8xf32> to vector<32x8xf32>
    %41 = arith.addf %36, %40 : vector<32x8xf32>
    %cst_19 = arith.constant 0.000000e+00 : f32
    %42 = vector.broadcast %cst_19 : f32 to vector<32x8xf32>
    %43 = arith.maximumf %41, %42 : vector<32x8xf32>
    %c1_i32_20 = arith.constant 1 : i32
    %44 = tpu.dynamic_rotate %43 by %c1_i32_20 dim 0 : vector<32x8xf32>, i32 -> vector<32x8xf32>
    %45 = vector.broadcast %0 : vector<32x1xf32> to vector<32x8xf32>
    %46 = arith.mulf %44, %45 : vector<32x8xf32>
    %c31_i32_21 = arith.constant 31 : i32
    %47 = tpu.dynamic_rotate %43 by %c31_i32_21 dim 0 : vector<32x8xf32>, i32 -> vector<32x8xf32>
    %48 = vector.broadcast %1 : vector<32x1xf32> to vector<32x8xf32>
    %49 = arith.mulf %47, %48 : vector<32x8xf32>
    %50 = tpu.concatenate %46, %43, %49 in 1 : vector<32x8xf32>, vector<32x8xf32>, vector<32x8xf32> -> vector<32x24xf32>
    %c0_22 = arith.constant 0 : index
    %c0_23 = arith.constant 0 : index
    %51 = vector.load %arg7[%c0_22, %c0_23] : memref<24x8xf32, #tpu.memory_space<vmem>>, vector<24x8xf32>
    %cst_24 = arith.constant dense<0.000000e+00> : vector<32x8xf32>
    %52 = tpu.matmul %50, %51, %cst_24 {dimension_numbers = #tpu.dot_dimension_numbers<[1], [0], [0], [1], [0, 0, 1, 1], [], []>} : vector<32x24xf32>, vector<24x8xf32>, vector<32x8xf32> -> vector<32x8xf32>
    %c0_25 = arith.constant 0 : index
    %c0_26 = arith.constant 0 : index
    %53 = vector.load %arg8[%c0_25, %c0_26] : memref<1x8xf32, #tpu.memory_space<vmem>>, vector<1x8xf32>
    %54 = vector.broadcast %53 : vector<1x8xf32> to vector<32x8xf32>
    %55 = arith.addf %52, %54 : vector<32x8xf32>
    %cst_27 = arith.constant dense<0.000000e+00> : vector<8xf32>
    %56 = vector.multi_reduction <add>, %55, %cst_27 [0] : vector<32x8xf32> to vector<8xf32>
    %57 = vector.shape_cast %56 : vector<8xf32> to vector<1x8xf32>
    %cst_28 = arith.constant 3.125000e-02 : f32
    %58 = vector.broadcast %cst_28 : f32 to vector<1x8xf32>
    %59 = arith.mulf %57, %58 : vector<1x8xf32>
    %60 = arith.mulf %55, %55 : vector<32x8xf32>
    %cst_29 = arith.constant dense<0.000000e+00> : vector<8xf32>
    %61 = vector.multi_reduction <add>, %60, %cst_29 [0] : vector<32x8xf32> to vector<8xf32>
    %62 = vector.shape_cast %61 : vector<8xf32> to vector<1x8xf32>
    %cst_30 = arith.constant 3.125000e-02 : f32
    %63 = vector.broadcast %cst_30 : f32 to vector<1x8xf32>
    %64 = arith.mulf %62, %63 : vector<1x8xf32>
    %65 = arith.mulf %59, %59 : vector<1x8xf32>
    %66 = arith.subf %64, %65 : vector<1x8xf32>
    %c0_31 = arith.constant 0 : index
    %c0_32 = arith.constant 0 : index
    %67 = vector.load %arg9[%c0_31, %c0_32] : memref<1x8xf32, #tpu.memory_space<vmem>>, vector<1x8xf32>
    %cst_33 = arith.constant 0.000000e+00 : f32
    %68 = vector.broadcast %cst_33 : f32 to vector<1x8xf32>
    %69 = arith.maximumf %66, %68 : vector<1x8xf32>
    %cst_34 = arith.constant 9.99999974E-6 : f32
    %70 = vector.broadcast %cst_34 : f32 to vector<1x8xf32>
    %71 = arith.addf %69, %70 : vector<1x8xf32>
    %72 = math.rsqrt %71 : vector<1x8xf32>
    %73 = arith.mulf %67, %72 : vector<1x8xf32>
    %74 = vector.broadcast %73 : vector<1x8xf32> to vector<32x8xf32>
    %75 = arith.mulf %55, %74 : vector<32x8xf32>
    %c0_35 = arith.constant 0 : index
    %c0_36 = arith.constant 0 : index
    %76 = vector.load %arg10[%c0_35, %c0_36] : memref<1x8xf32, #tpu.memory_space<vmem>>, vector<1x8xf32>
    %77 = arith.mulf %59, %73 : vector<1x8xf32>
    %78 = arith.subf %76, %77 : vector<1x8xf32>
    %79 = vector.broadcast %78 : vector<1x8xf32> to vector<32x8xf32>
    %80 = arith.addf %75, %79 : vector<32x8xf32>
    %81 = arith.addf %80, %16 : vector<32x8xf32>
    %cst_37 = arith.constant 0.000000e+00 : f32
    %82 = vector.broadcast %cst_37 : f32 to vector<32x8xf32>
    %83 = arith.maximumf %81, %82 : vector<32x8xf32>
    %c1_i32_38 = arith.constant 1 : i32
    %84 = tpu.dynamic_rotate %83 by %c1_i32_38 dim 0 : vector<32x8xf32>, i32 -> vector<32x8xf32>
    %85 = vector.broadcast %0 : vector<32x1xf32> to vector<32x8xf32>
    %86 = arith.mulf %84, %85 : vector<32x8xf32>
    %c31_i32_39 = arith.constant 31 : i32
    %87 = tpu.dynamic_rotate %83 by %c31_i32_39 dim 0 : vector<32x8xf32>, i32 -> vector<32x8xf32>
    %88 = vector.broadcast %1 : vector<32x1xf32> to vector<32x8xf32>
    %89 = arith.mulf %87, %88 : vector<32x8xf32>
    %90 = tpu.concatenate %86, %83, %89 in 1 : vector<32x8xf32>, vector<32x8xf32>, vector<32x8xf32> -> vector<32x24xf32>
    %c0_40 = arith.constant 0 : index
    %c0_41 = arith.constant 0 : index
    %91 = vector.load %arg11[%c0_40, %c0_41] : memref<24x32xf32, #tpu.memory_space<vmem>>, vector<24x32xf32>
    %cst_42 = arith.constant dense<0.000000e+00> : vector<32x32xf32>
    %92 = tpu.matmul %90, %91, %cst_42 {dimension_numbers = #tpu.dot_dimension_numbers<[1], [0], [0], [1], [0, 0, 1, 1], [], []>} : vector<32x24xf32>, vector<24x32xf32>, vector<32x32xf32> -> vector<32x32xf32>
    %c0_43 = arith.constant 0 : index
    %c0_44 = arith.constant 0 : index
    %93 = vector.load %arg12[%c0_43, %c0_44] : memref<1x32xf32, #tpu.memory_space<vmem>>, vector<1x32xf32>
    %94 = vector.broadcast %93 : vector<1x32xf32> to vector<32x32xf32>
    %95 = arith.addf %92, %94 : vector<32x32xf32>
    %96 = vector.extract_strided_slice %95 {offsets = [0, 0], sizes = [32, 16], strides = [1, 1]} : vector<32x32xf32> to vector<32x16xf32>
    %97 = vector.extract_strided_slice %95 {offsets = [0, 16], sizes = [32, 16], strides = [1, 1]} : vector<32x32xf32> to vector<32x16xf32>
    %cst_45 = arith.constant dense<0.000000e+00> : vector<16xf32>
    %98 = vector.multi_reduction <add>, %96, %cst_45 [0] : vector<32x16xf32> to vector<16xf32>
    %99 = vector.shape_cast %98 : vector<16xf32> to vector<1x16xf32>
    %cst_46 = arith.constant 3.125000e-02 : f32
    %100 = vector.broadcast %cst_46 : f32 to vector<1x16xf32>
    %101 = arith.mulf %99, %100 : vector<1x16xf32>
    %102 = arith.mulf %96, %96 : vector<32x16xf32>
    %cst_47 = arith.constant dense<0.000000e+00> : vector<16xf32>
    %103 = vector.multi_reduction <add>, %102, %cst_47 [0] : vector<32x16xf32> to vector<16xf32>
    %104 = vector.shape_cast %103 : vector<16xf32> to vector<1x16xf32>
    %cst_48 = arith.constant 3.125000e-02 : f32
    %105 = vector.broadcast %cst_48 : f32 to vector<1x16xf32>
    %106 = arith.mulf %104, %105 : vector<1x16xf32>
    %107 = arith.mulf %101, %101 : vector<1x16xf32>
    %108 = arith.subf %106, %107 : vector<1x16xf32>
    %c0_49 = arith.constant 0 : index
    %c0_50 = arith.constant 0 : index
    %109 = vector.load %arg13[%c0_49, %c0_50] : memref<1x16xf32, #tpu.memory_space<vmem>>, vector<1x16xf32>
    %cst_51 = arith.constant 0.000000e+00 : f32
    %110 = vector.broadcast %cst_51 : f32 to vector<1x16xf32>
    %111 = arith.maximumf %108, %110 : vector<1x16xf32>
    %cst_52 = arith.constant 9.99999974E-6 : f32
    %112 = vector.broadcast %cst_52 : f32 to vector<1x16xf32>
    %113 = arith.addf %111, %112 : vector<1x16xf32>
    %114 = math.rsqrt %113 : vector<1x16xf32>
    %115 = arith.mulf %109, %114 : vector<1x16xf32>
    %116 = vector.broadcast %115 : vector<1x16xf32> to vector<32x16xf32>
    %117 = arith.mulf %96, %116 : vector<32x16xf32>
    %c0_53 = arith.constant 0 : index
    %c0_54 = arith.constant 0 : index
    %118 = vector.load %arg14[%c0_53, %c0_54] : memref<1x16xf32, #tpu.memory_space<vmem>>, vector<1x16xf32>
    %119 = arith.mulf %101, %115 : vector<1x16xf32>
    %120 = arith.subf %118, %119 : vector<1x16xf32>
    %121 = vector.broadcast %120 : vector<1x16xf32> to vector<32x16xf32>
    %122 = arith.addf %117, %121 : vector<32x16xf32>
    %cst_55 = arith.constant 0.000000e+00 : f32
    %123 = vector.broadcast %cst_55 : f32 to vector<32x16xf32>
    %124 = arith.maximumf %122, %123 : vector<32x16xf32>
    %c1_i32_56 = arith.constant 1 : i32
    %125 = tpu.dynamic_rotate %124 by %c1_i32_56 dim 0 : vector<32x16xf32>, i32 -> vector<32x16xf32>
    %126 = vector.broadcast %0 : vector<32x1xf32> to vector<32x16xf32>
    %127 = arith.mulf %125, %126 : vector<32x16xf32>
    %c31_i32_57 = arith.constant 31 : i32
    %128 = tpu.dynamic_rotate %124 by %c31_i32_57 dim 0 : vector<32x16xf32>, i32 -> vector<32x16xf32>
    %129 = vector.broadcast %1 : vector<32x1xf32> to vector<32x16xf32>
    %130 = arith.mulf %128, %129 : vector<32x16xf32>
    %131 = tpu.concatenate %127, %124, %130 in 1 : vector<32x16xf32>, vector<32x16xf32>, vector<32x16xf32> -> vector<32x48xf32>
    %c0_58 = arith.constant 0 : index
    %c0_59 = arith.constant 0 : index
    %132 = vector.load %arg15[%c0_58, %c0_59] : memref<48x16xf32, #tpu.memory_space<vmem>>, vector<48x16xf32>
    %cst_60 = arith.constant dense<0.000000e+00> : vector<32x16xf32>
    %133 = tpu.matmul %131, %132, %cst_60 {dimension_numbers = #tpu.dot_dimension_numbers<[1], [0], [0], [1], [0, 0, 1, 1], [], []>} : vector<32x48xf32>, vector<48x16xf32>, vector<32x16xf32> -> vector<32x16xf32>
    %c0_61 = arith.constant 0 : index
    %c0_62 = arith.constant 0 : index
    %134 = vector.load %arg16[%c0_61, %c0_62] : memref<1x16xf32, #tpu.memory_space<vmem>>, vector<1x16xf32>
    %135 = vector.broadcast %134 : vector<1x16xf32> to vector<32x16xf32>
    %136 = arith.addf %133, %135 : vector<32x16xf32>
    %cst_63 = arith.constant dense<0.000000e+00> : vector<16xf32>
    %137 = vector.multi_reduction <add>, %136, %cst_63 [0] : vector<32x16xf32> to vector<16xf32>
    %138 = vector.shape_cast %137 : vector<16xf32> to vector<1x16xf32>
    %cst_64 = arith.constant 3.125000e-02 : f32
    %139 = vector.broadcast %cst_64 : f32 to vector<1x16xf32>
    %140 = arith.mulf %138, %139 : vector<1x16xf32>
    %141 = arith.mulf %136, %136 : vector<32x16xf32>
    %cst_65 = arith.constant dense<0.000000e+00> : vector<16xf32>
    %142 = vector.multi_reduction <add>, %141, %cst_65 [0] : vector<32x16xf32> to vector<16xf32>
    %143 = vector.shape_cast %142 : vector<16xf32> to vector<1x16xf32>
    %cst_66 = arith.constant 3.125000e-02 : f32
    %144 = vector.broadcast %cst_66 : f32 to vector<1x16xf32>
    %145 = arith.mulf %143, %144 : vector<1x16xf32>
    %146 = arith.mulf %140, %140 : vector<1x16xf32>
    %147 = arith.subf %145, %146 : vector<1x16xf32>
    %c0_67 = arith.constant 0 : index
    %c0_68 = arith.constant 0 : index
    %148 = vector.load %arg17[%c0_67, %c0_68] : memref<1x16xf32, #tpu.memory_space<vmem>>, vector<1x16xf32>
    %cst_69 = arith.constant 0.000000e+00 : f32
    %149 = vector.broadcast %cst_69 : f32 to vector<1x16xf32>
    %150 = arith.maximumf %147, %149 : vector<1x16xf32>
    %cst_70 = arith.constant 9.99999974E-6 : f32
    %151 = vector.broadcast %cst_70 : f32 to vector<1x16xf32>
    %152 = arith.addf %150, %151 : vector<1x16xf32>
    %153 = math.rsqrt %152 : vector<1x16xf32>
    %154 = arith.mulf %148, %153 : vector<1x16xf32>
    %155 = vector.broadcast %154 : vector<1x16xf32> to vector<32x16xf32>
    %156 = arith.mulf %136, %155 : vector<32x16xf32>
    %c0_71 = arith.constant 0 : index
    %c0_72 = arith.constant 0 : index
    %157 = vector.load %arg18[%c0_71, %c0_72] : memref<1x16xf32, #tpu.memory_space<vmem>>, vector<1x16xf32>
    %158 = arith.mulf %140, %154 : vector<1x16xf32>
    %159 = arith.subf %157, %158 : vector<1x16xf32>
    %160 = vector.broadcast %159 : vector<1x16xf32> to vector<32x16xf32>
    %161 = arith.addf %156, %160 : vector<32x16xf32>
    %162 = arith.addf %161, %97 : vector<32x16xf32>
    %cst_73 = arith.constant 0.000000e+00 : f32
    %163 = vector.broadcast %cst_73 : f32 to vector<32x16xf32>
    %164 = arith.maximumf %162, %163 : vector<32x16xf32>
    %c1_i32_74 = arith.constant 1 : i32
    %165 = tpu.dynamic_rotate %164 by %c1_i32_74 dim 0 : vector<32x16xf32>, i32 -> vector<32x16xf32>
    %166 = vector.broadcast %0 : vector<32x1xf32> to vector<32x16xf32>
    %167 = arith.mulf %165, %166 : vector<32x16xf32>
    %c31_i32_75 = arith.constant 31 : i32
    %168 = tpu.dynamic_rotate %164 by %c31_i32_75 dim 0 : vector<32x16xf32>, i32 -> vector<32x16xf32>
    %169 = vector.broadcast %1 : vector<32x1xf32> to vector<32x16xf32>
    %170 = arith.mulf %168, %169 : vector<32x16xf32>
    %171 = tpu.concatenate %167, %164, %170 in 1 : vector<32x16xf32>, vector<32x16xf32>, vector<32x16xf32> -> vector<32x48xf32>
    %c0_76 = arith.constant 0 : index
    %c0_77 = arith.constant 0 : index
    %172 = vector.load %arg19[%c0_76, %c0_77] : memref<48x64xf32, #tpu.memory_space<vmem>>, vector<48x64xf32>
    %cst_78 = arith.constant dense<0.000000e+00> : vector<32x64xf32>
    %173 = tpu.matmul %171, %172, %cst_78 {dimension_numbers = #tpu.dot_dimension_numbers<[1], [0], [0], [1], [0, 0, 1, 1], [], []>} : vector<32x48xf32>, vector<48x64xf32>, vector<32x64xf32> -> vector<32x64xf32>
    %c0_79 = arith.constant 0 : index
    %c0_80 = arith.constant 0 : index
    %174 = vector.load %arg20[%c0_79, %c0_80] : memref<1x64xf32, #tpu.memory_space<vmem>>, vector<1x64xf32>
    %175 = vector.broadcast %174 : vector<1x64xf32> to vector<32x64xf32>
    %176 = arith.addf %173, %175 : vector<32x64xf32>
    %177 = vector.extract_strided_slice %176 {offsets = [0, 0], sizes = [32, 32], strides = [1, 1]} : vector<32x64xf32> to vector<32x32xf32>
    %178 = vector.extract_strided_slice %176 {offsets = [0, 32], sizes = [32, 32], strides = [1, 1]} : vector<32x64xf32> to vector<32x32xf32>
    %cst_81 = arith.constant dense<0.000000e+00> : vector<32xf32>
    %179 = vector.multi_reduction <add>, %177, %cst_81 [0] : vector<32x32xf32> to vector<32xf32>
    %180 = vector.shape_cast %179 : vector<32xf32> to vector<1x32xf32>
    %cst_82 = arith.constant 3.125000e-02 : f32
    %181 = vector.broadcast %cst_82 : f32 to vector<1x32xf32>
    %182 = arith.mulf %180, %181 : vector<1x32xf32>
    %183 = arith.mulf %177, %177 : vector<32x32xf32>
    %cst_83 = arith.constant dense<0.000000e+00> : vector<32xf32>
    %184 = vector.multi_reduction <add>, %183, %cst_83 [0] : vector<32x32xf32> to vector<32xf32>
    %185 = vector.shape_cast %184 : vector<32xf32> to vector<1x32xf32>
    %cst_84 = arith.constant 3.125000e-02 : f32
    %186 = vector.broadcast %cst_84 : f32 to vector<1x32xf32>
    %187 = arith.mulf %185, %186 : vector<1x32xf32>
    %188 = arith.mulf %182, %182 : vector<1x32xf32>
    %189 = arith.subf %187, %188 : vector<1x32xf32>
    %c0_85 = arith.constant 0 : index
    %c0_86 = arith.constant 0 : index
    %190 = vector.load %arg21[%c0_85, %c0_86] : memref<1x32xf32, #tpu.memory_space<vmem>>, vector<1x32xf32>
    %cst_87 = arith.constant 0.000000e+00 : f32
    %191 = vector.broadcast %cst_87 : f32 to vector<1x32xf32>
    %192 = arith.maximumf %189, %191 : vector<1x32xf32>
    %cst_88 = arith.constant 9.99999974E-6 : f32
    %193 = vector.broadcast %cst_88 : f32 to vector<1x32xf32>
    %194 = arith.addf %192, %193 : vector<1x32xf32>
    %195 = math.rsqrt %194 : vector<1x32xf32>
    %196 = arith.mulf %190, %195 : vector<1x32xf32>
    %197 = vector.broadcast %196 : vector<1x32xf32> to vector<32x32xf32>
    %198 = arith.mulf %177, %197 : vector<32x32xf32>
    %c0_89 = arith.constant 0 : index
    %c0_90 = arith.constant 0 : index
    %199 = vector.load %arg22[%c0_89, %c0_90] : memref<1x32xf32, #tpu.memory_space<vmem>>, vector<1x32xf32>
    %200 = arith.mulf %182, %196 : vector<1x32xf32>
    %201 = arith.subf %199, %200 : vector<1x32xf32>
    %202 = vector.broadcast %201 : vector<1x32xf32> to vector<32x32xf32>
    %203 = arith.addf %198, %202 : vector<32x32xf32>
    %cst_91 = arith.constant 0.000000e+00 : f32
    %204 = vector.broadcast %cst_91 : f32 to vector<32x32xf32>
    %205 = arith.maximumf %203, %204 : vector<32x32xf32>
    %c1_i32_92 = arith.constant 1 : i32
    %206 = tpu.dynamic_rotate %205 by %c1_i32_92 dim 0 : vector<32x32xf32>, i32 -> vector<32x32xf32>
    %207 = vector.broadcast %0 : vector<32x1xf32> to vector<32x32xf32>
    %208 = arith.mulf %206, %207 : vector<32x32xf32>
    %c31_i32_93 = arith.constant 31 : i32
    %209 = tpu.dynamic_rotate %205 by %c31_i32_93 dim 0 : vector<32x32xf32>, i32 -> vector<32x32xf32>
    %210 = vector.broadcast %1 : vector<32x1xf32> to vector<32x32xf32>
    %211 = arith.mulf %209, %210 : vector<32x32xf32>
    %212 = tpu.concatenate %208, %205, %211 in 1 : vector<32x32xf32>, vector<32x32xf32>, vector<32x32xf32> -> vector<32x96xf32>
    %c0_94 = arith.constant 0 : index
    %c0_95 = arith.constant 0 : index
    %213 = vector.load %arg23[%c0_94, %c0_95] : memref<96x32xf32, #tpu.memory_space<vmem>>, vector<96x32xf32>
    %cst_96 = arith.constant dense<0.000000e+00> : vector<32x32xf32>
    %214 = tpu.matmul %212, %213, %cst_96 {dimension_numbers = #tpu.dot_dimension_numbers<[1], [0], [0], [1], [0, 0, 1, 1], [], []>} : vector<32x96xf32>, vector<96x32xf32>, vector<32x32xf32> -> vector<32x32xf32>
    %c0_97 = arith.constant 0 : index
    %c0_98 = arith.constant 0 : index
    %215 = vector.load %arg24[%c0_97, %c0_98] : memref<1x32xf32, #tpu.memory_space<vmem>>, vector<1x32xf32>
    %216 = vector.broadcast %215 : vector<1x32xf32> to vector<32x32xf32>
    %217 = arith.addf %214, %216 : vector<32x32xf32>
    %cst_99 = arith.constant dense<0.000000e+00> : vector<32xf32>
    %218 = vector.multi_reduction <add>, %217, %cst_99 [0] : vector<32x32xf32> to vector<32xf32>
    %219 = vector.shape_cast %218 : vector<32xf32> to vector<1x32xf32>
    %cst_100 = arith.constant 3.125000e-02 : f32
    %220 = vector.broadcast %cst_100 : f32 to vector<1x32xf32>
    %221 = arith.mulf %219, %220 : vector<1x32xf32>
    %222 = arith.mulf %217, %217 : vector<32x32xf32>
    %cst_101 = arith.constant dense<0.000000e+00> : vector<32xf32>
    %223 = vector.multi_reduction <add>, %222, %cst_101 [0] : vector<32x32xf32> to vector<32xf32>
    %224 = vector.shape_cast %223 : vector<32xf32> to vector<1x32xf32>
    %cst_102 = arith.constant 3.125000e-02 : f32
    %225 = vector.broadcast %cst_102 : f32 to vector<1x32xf32>
    %226 = arith.mulf %224, %225 : vector<1x32xf32>
    %227 = arith.mulf %221, %221 : vector<1x32xf32>
    %228 = arith.subf %226, %227 : vector<1x32xf32>
    %c0_103 = arith.constant 0 : index
    %c0_104 = arith.constant 0 : index
    %229 = vector.load %arg25[%c0_103, %c0_104] : memref<1x32xf32, #tpu.memory_space<vmem>>, vector<1x32xf32>
    %cst_105 = arith.constant 0.000000e+00 : f32
    %230 = vector.broadcast %cst_105 : f32 to vector<1x32xf32>
    %231 = arith.maximumf %228, %230 : vector<1x32xf32>
    %cst_106 = arith.constant 9.99999974E-6 : f32
    %232 = vector.broadcast %cst_106 : f32 to vector<1x32xf32>
    %233 = arith.addf %231, %232 : vector<1x32xf32>
    %234 = math.rsqrt %233 : vector<1x32xf32>
    %235 = arith.mulf %229, %234 : vector<1x32xf32>
    %236 = vector.broadcast %235 : vector<1x32xf32> to vector<32x32xf32>
    %237 = arith.mulf %217, %236 : vector<32x32xf32>
    %c0_107 = arith.constant 0 : index
    %c0_108 = arith.constant 0 : index
    %238 = vector.load %arg26[%c0_107, %c0_108] : memref<1x32xf32, #tpu.memory_space<vmem>>, vector<1x32xf32>
    %239 = arith.mulf %221, %235 : vector<1x32xf32>
    %240 = arith.subf %238, %239 : vector<1x32xf32>
    %241 = vector.broadcast %240 : vector<1x32xf32> to vector<32x32xf32>
    %242 = arith.addf %237, %241 : vector<32x32xf32>
    %243 = arith.addf %242, %178 : vector<32x32xf32>
    %cst_109 = arith.constant 0.000000e+00 : f32
    %244 = vector.broadcast %cst_109 : f32 to vector<32x32xf32>
    %245 = arith.maximumf %243, %244 : vector<32x32xf32>
    %246 = vector.shape_cast %245 : vector<32x32xf32> to vector<2x16x32xf32>
    %247 = tpu.transpose %246, [0, 2, 1] : vector<2x16x32xf32> -> vector<2x32x16xf32>
    %248 = vector.shape_cast %247 : vector<2x32x16xf32> to vector<64x16xf32>
    %c0_110 = arith.constant 0 : index
    %c0_111 = arith.constant 0 : index
    %249 = vector.load %arg27[%c0_110, %c0_111] : memref<16x16xf32, #tpu.memory_space<vmem>>, vector<16x16xf32>
    %cst_112 = arith.constant dense<0.000000e+00> : vector<64x16xf32>
    %250 = tpu.matmul %248, %249, %cst_112 {dimension_numbers = #tpu.dot_dimension_numbers<[1], [0], [0], [1], [0, 0, 1, 1], [], []>} : vector<64x16xf32>, vector<16x16xf32>, vector<64x16xf32> -> vector<64x16xf32>
    %c0_113 = arith.constant 0 : index
    %c0_114 = arith.constant 0 : index
    %251 = vector.load %arg28[%c0_113, %c0_114] : memref<1x16xf32, #tpu.memory_space<vmem>>, vector<1x16xf32>
    %252 = vector.broadcast %251 : vector<1x16xf32> to vector<64x16xf32>
    %253 = arith.addf %250, %252 : vector<64x16xf32>
    %cst_115 = arith.constant dense<0xFF800000> : vector<64xf32>
    %254 = vector.multi_reduction <maximumf>, %253, %cst_115 [1] : vector<64x16xf32> to vector<64xf32>
    %255 = vector.shape_cast %254 : vector<64xf32> to vector<64x1xf32>
    %256 = vector.broadcast %255 : vector<64x1xf32> to vector<64x16xf32>
    %257 = arith.subf %253, %256 : vector<64x16xf32>
    %258 = math.exp %257 : vector<64x16xf32>
    %cst_116 = arith.constant dense<0.000000e+00> : vector<64xf32>
    %259 = vector.multi_reduction <add>, %258, %cst_116 [1] : vector<64x16xf32> to vector<64xf32>
    %260 = vector.shape_cast %259 : vector<64xf32> to vector<64x1xf32>
    %261 = tpu.reciprocal %260 {approx = true} : vector<64x1xf32> -> vector<64x1xf32>
    %262 = vector.broadcast %261 : vector<64x1xf32> to vector<64x16xf32>
    %263 = arith.mulf %258, %262 : vector<64x16xf32>
    %264 = arith.mulf %248, %263 : vector<64x16xf32>
    %265 = vector.shape_cast %264 : vector<64x16xf32> to vector<2x32x16xf32>
    %cst_117 = arith.constant dense<0.000000e+00> : vector<2x32xf32>
    %266 = vector.multi_reduction <add>, %265, %cst_117 [2] : vector<2x32x16xf32> to vector<2x32xf32>
    %cst_118 = arith.constant 6.250000e-02 : f32
    %267 = vector.broadcast %cst_118 : f32 to vector<2x32xf32>
    %268 = arith.mulf %266, %267 : vector<2x32xf32>
    %c0_119 = arith.constant 0 : index
    %c0_120 = arith.constant 0 : index
    %269 = vector.load %arg29[%c0_119, %c0_120] : memref<32x32xf32, #tpu.memory_space<vmem>>, vector<32x32xf32>
    %cst_121 = arith.constant dense<0.000000e+00> : vector<2x32xf32>
    %270 = tpu.matmul %268, %269, %cst_121 {dimension_numbers = #tpu.dot_dimension_numbers<[1], [0], [0], [1], [0, 0, 1, 1], [], []>} : vector<2x32xf32>, vector<32x32xf32>, vector<2x32xf32> -> vector<2x32xf32>
    %c0_122 = arith.constant 0 : index
    %c0_123 = arith.constant 0 : index
    %271 = vector.load %arg30[%c0_122, %c0_123] : memref<1x32xf32, #tpu.memory_space<vmem>>, vector<1x32xf32>
    %272 = vector.broadcast %271 : vector<1x32xf32> to vector<2x32xf32>
    %273 = arith.addf %270, %272 : vector<2x32xf32>
    %cst_124 = arith.constant dense<0xFF800000> : vector<2xf32>
    %274 = vector.multi_reduction <maximumf>, %273, %cst_124 [1] : vector<2x32xf32> to vector<2xf32>
    %275 = vector.shape_cast %274 : vector<2xf32> to vector<2x1xf32>
    %276 = vector.broadcast %275 : vector<2x1xf32> to vector<2x32xf32>
    %277 = arith.subf %273, %276 : vector<2x32xf32>
    %278 = math.exp %277 : vector<2x32xf32>
    %cst_125 = arith.constant dense<0.000000e+00> : vector<2xf32>
    %279 = vector.multi_reduction <add>, %278, %cst_125 [1] : vector<2x32xf32> to vector<2xf32>
    %280 = vector.shape_cast %279 : vector<2xf32> to vector<2x1xf32>
    %281 = tpu.reciprocal %280 {approx = true} : vector<2x1xf32> -> vector<2x1xf32>
    %282 = vector.broadcast %281 : vector<2x1xf32> to vector<2x32xf32>
    %283 = arith.mulf %278, %282 : vector<2x32xf32>
    %284 = vector.shape_cast %283 : vector<2x32xf32> to vector<2x32x1xf32>
    %285 = vector.broadcast %284 : vector<2x32x1xf32> to vector<2x32x16xf32>
    %286 = arith.mulf %265, %285 : vector<2x32x16xf32>
    %cst_126 = arith.constant dense<0.000000e+00> : vector<2x32xf32>
    %287 = vector.multi_reduction <add>, %286, %cst_126 [2] : vector<2x32x16xf32> to vector<2x32xf32>
    %c0_127 = arith.constant 0 : index
    %c0_128 = arith.constant 0 : index
    %288 = vector.load %arg31[%c0_127, %c0_128] : memref<32x256xf32, #tpu.memory_space<vmem>>, vector<32x256xf32>
    %cst_129 = arith.constant dense<0.000000e+00> : vector<2x256xf32>
    %289 = tpu.matmul %287, %288, %cst_129 {dimension_numbers = #tpu.dot_dimension_numbers<[1], [0], [0], [1], [0, 0, 1, 1], [], []>} : vector<2x32xf32>, vector<32x256xf32>, vector<2x256xf32> -> vector<2x256xf32>
    %c0_130 = arith.constant 0 : index
    %c0_131 = arith.constant 0 : index
    %290 = vector.load %arg32[%c0_130, %c0_131] : memref<1x256xf32, #tpu.memory_space<vmem>>, vector<1x256xf32>
    %291 = vector.broadcast %290 : vector<1x256xf32> to vector<2x256xf32>
    %292 = arith.addf %289, %291 : vector<2x256xf32>
    %cst_132 = arith.constant 0.000000e+00 : f32
    %293 = vector.broadcast %cst_132 : f32 to vector<2x256xf32>
    %294 = arith.maximumf %292, %293 : vector<2x256xf32>
    %c0_133 = arith.constant 0 : index
    %c0_134 = arith.constant 0 : index
    %295 = vector.load %arg33[%c0_133, %c0_134] : memref<256x5xf32, #tpu.memory_space<vmem>>, vector<256x5xf32>
    %cst_135 = arith.constant dense<0.000000e+00> : vector<2x5xf32>
    %296 = tpu.matmul %294, %295, %cst_135 {dimension_numbers = #tpu.dot_dimension_numbers<[1], [0], [0], [1], [0, 0, 1, 1], [], []>} : vector<2x256xf32>, vector<256x5xf32>, vector<2x5xf32> -> vector<2x5xf32>
    %c0_136 = arith.constant 0 : index
    %c0_137 = arith.constant 0 : index
    %297 = vector.load %arg34[%c0_136, %c0_137] : memref<1x5xf32, #tpu.memory_space<vmem>>, vector<1x5xf32>
    %298 = vector.broadcast %297 : vector<1x5xf32> to vector<2x5xf32>
    %299 = arith.addf %296, %298 : vector<2x5xf32>
    %c0_138 = arith.constant 0 : index
    %c0_139 = arith.constant 0 : index
    %300 = vector.load %arg35[%c0_138, %c0_139] : memref<2x5xf32, #tpu.memory_space<vmem>>, vector<2x5xf32>
    tpu.vector_store %arg35[%c0_138, %c0_139], %299 {strides = array<i32>} : memref<2x5xf32, #tpu.memory_space<vmem>>, vector<2x5xf32>,
    return
  }
}

</mosaic_0001>

<llo_original>
// kernel: cnn_residual_attention.1
$region0: #{cnn_residual_attention.1}
  #allocation0 [shape = 'u32[]', space=smem, size = 0x4, offset = 0x4, fixed_abs, tag = 'smem constant byte address 0x4 - core index']
  #allocation1 [shape = 'u32[144,128]{1,0:T(1,128)}', space=vmem, size = 0x12000, scoped, tag = 'internal scratch']
  %s0 = inlined_call_operand.smem [shape: u32[36], index: -1, kind: input, shape index: {}]
  %s1 = sld [smem:[%s0]]
  %s2 = scalar_lea.smem %s0, 1
  %s3 = sld [smem:[%s2]]
  %s4 = scalar_lea.smem %s0, 2
  %s5 = sld [smem:[%s4]]
  %s6 = scalar_lea.smem %s0, 3
  %s7 = sld [smem:[%s6]]
  %s8 = scalar_lea.smem %s0, 4
  %s9 = sld [smem:[%s8]]
  %s10 = scalar_lea.smem %s0, 5
  %s11 = sld [smem:[%s10]]
  %s12 = scalar_lea.smem %s0, 6
  %s13 = sld [smem:[%s12]]
  %s14 = scalar_lea.smem %s0, 7
  %s15 = sld [smem:[%s14]]
  %s16 = scalar_lea.smem %s0, 8
  %s17 = sld [smem:[%s16]]
  %s18 = scalar_lea.smem %s0, 9
  %s19 = sld [smem:[%s18]]
  %s20 = scalar_lea.smem %s0, 10
  %s21 = sld [smem:[%s20]]
  %s22 = scalar_lea.smem %s0, 11
  %s23 = sld [smem:[%s22]]
  %s24 = scalar_lea.smem %s0, 12
  %s25 = sld [smem:[%s24]]
  %s26 = scalar_lea.smem %s0, 13
  %s27 = sld [smem:[%s26]]
  %s28 = scalar_lea.smem %s0, 14
  %s29 = sld [smem:[%s28]]
  %s30 = scalar_lea.smem %s0, 15
  %s31 = sld [smem:[%s30]]
  %s32 = scalar_lea.smem %s0, 16
  %s33 = sld [smem:[%s32]]
  %s34 = scalar_lea.smem %s0, 17
  %s35 = sld [smem:[%s34]]
  %s36 = scalar_lea.smem %s0, 18
  %s37 = sld [smem:[%s36]]
  %s38 = scalar_lea.smem %s0, 19
  %s39 = sld [smem:[%s38]]
  %s40 = scalar_lea.smem %s0, 20
  %s41 = sld [smem:[%s40]]
  %s42 = scalar_lea.smem %s0, 21
  %s43 = sld [smem:[%s42]]
  %s44 = scalar_lea.smem %s0, 22
  %s45 = sld [smem:[%s44]]
  %s46 = scalar_lea.smem %s0, 23
  %s47 = sld [smem:[%s46]]
  %s48 = scalar_lea.smem %s0, 24
  %s49 = sld [smem:[%s48]]
  %s50 = scalar_lea.smem %s0, 25
  %s51 = sld [smem:[%s50]]
  %s52 = scalar_lea.smem %s0, 26
  %s53 = sld [smem:[%s52]]
  %s54 = scalar_lea.smem %s0, 27
  %s55 = sld [smem:[%s54]]
  %s56 = scalar_lea.smem %s0, 28
  %s57 = sld [smem:[%s56]]
  %s58 = scalar_lea.smem %s0, 29
  %s59 = sld [smem:[%s58]]
  %s60 = scalar_lea.smem %s0, 30
  %s61 = sld [smem:[%s60]]
  %s62 = scalar_lea.smem %s0, 31
  %s63 = sld [smem:[%s62]]
  %s64 = scalar_lea.smem %s0, 32
  %s65 = sld [smem:[%s64]]
  %s66 = scalar_lea.smem %s0, 33
  %s67 = sld [smem:[%s66]]
  %s68 = scalar_lea.smem %s0, 34
  %s69 = sld [smem:[%s68]]
  %s70 = scalar_lea.smem %s0, 35
  %s71 = sld [smem:[%s70]]
  %s72 = sld [smem:[#allocation0]]
  $region150: #{cnn_residual_attention.1} parent=0
    _
  %s74 = ssub.s32 1, %s72
  %s75 = scalar_select 0, %s74, %s72
  $region1: #{cnn_residual_attention.1} parent=0
    #allocation2 [shape = 'u8[1024]{0}', space=vmem, size = 0x400, scoped, tag = 'output window, operand 0, single buffered']
    #allocation3 [shape = 's32[1]{0}', space=sflag, size = 0x4, scoped, tag = 'scoped memory for cnn_residual_attention.1']
    %76 = vsyncpa [#allocation3], 0
    // Predicated region
    $region2: #{cnn_residual_attention.1} parent=1 // pred_check
      _
    $region3: #{cnn_residual_attention.1} parent=1 // pred_check_branch
      %78 = sbr.rel (0) target = $region5
    $region4: #{cnn_residual_attention.1} parent=1 // pred_region
      _
    $region5: #{cnn_residual_attention.1} parent=1 // pred_fallthru
      _
    // Predicated region
    $region6: #{cnn_residual_attention.1} parent=1 // pred_check
      _
    $region7: #{cnn_residual_attention.1} parent=1 // pred_check_branch
      %80 = sbr.rel (0) target = $region9
    $region8: #{cnn_residual_attention.1} parent=1 // pred_region
      _
    $region9: #{cnn_residual_attention.1} parent=1 // pred_fallthru
      _
    // Predicated region
    $region10: #{cnn_residual_attention.1} parent=1 // pred_check
      _
    $region11: #{cnn_residual_attention.1} parent=1 // pred_check_branch
      %82 = sbr.rel (0) target = $region13
    $region12: #{cnn_residual_attention.1} parent=1 // pred_region
      _
    $region13: #{cnn_residual_attention.1} parent=1 // pred_fallthru
      _
    // Predicated region
    $region14: #{cnn_residual_attention.1} parent=1 // pred_check
      _
    $region15: #{cnn_residual_attention.1} parent=1 // pred_check_branch
      %84 = sbr.rel (0) target = $region17
    $region16: #{cnn_residual_attention.1} parent=1 // pred_region
      _
    $region17: #{cnn_residual_attention.1} parent=1 // pred_fallthru
      _
    // Predicated region
    $region18: #{cnn_residual_attention.1} parent=1 // pred_check
      _
    $region19: #{cnn_residual_attention.1} parent=1 // pred_check_branch
      %86 = sbr.rel (0) target = $region21
    $region20: #{cnn_residual_attention.1} parent=1 // pred_region
      _
    $region21: #{cnn_residual_attention.1} parent=1 // pred_fallthru
      _
    // Predicated region
    $region22: #{cnn_residual_attention.1} parent=1 // pred_check
      _
    $region23: #{cnn_residual_attention.1} parent=1 // pred_check_branch
      %88 = sbr.rel (0) target = $region25
    $region24: #{cnn_residual_attention.1} parent=1 // pred_region
      _
    $region25: #{cnn_residual_attention.1} parent=1 // pred_fallthru
      _
    // Predicated region
    $region26: #{cnn_residual_attention.1} parent=1 // pred_check
      _
    $region27: #{cnn_residual_attention.1} parent=1 // pred_check_branch
      %90 = sbr.rel (0) target = $region29
    $region28: #{cnn_residual_attention.1} parent=1 // pred_region
      _
    $region29: #{cnn_residual_attention.1} parent=1 // pred_fallthru
      _
    // Predicated region
    $region30: #{cnn_residual_attention.1} parent=1 // pred_check
      _
    $region31: #{cnn_residual_attention.1} parent=1 // pred_check_branch
      %92 = sbr.rel (0) target = $region33
    $region32: #{cnn_residual_attention.1} parent=1 // pred_region
      _
    $region33: #{cnn_residual_attention.1} parent=1 // pred_fallthru
      _
    // Predicated region
    $region34: #{cnn_residual_attention.1} parent=1 // pred_check
      _
    $region35: #{cnn_residual_attention.1} parent=1 // pred_check_branch
      %94 = sbr.rel (0) target = $region37
    $region36: #{cnn_residual_attention.1} parent=1 // pred_region
      _
    $region37: #{cnn_residual_attention.1} parent=1 // pred_fallthru
      _
    // Predicated region
    $region38: #{cnn_residual_attention.1} parent=1 // pred_check
      _
    $region39: #{cnn_residual_attention.1} parent=1 // pred_check_branch
      %96 = sbr.rel (0) target = $region41
    $region40: #{cnn_residual_attention.1} parent=1 // pred_region
      _
    $region41: #{cnn_residual_attention.1} parent=1 // pred_fallthru
      _
    // Predicated region
    $region42: #{cnn_residual_attention.1} parent=1 // pred_check
      _
    $region43: #{cnn_residual_attention.1} parent=1 // pred_check_branch
      %98 = sbr.rel (0) target = $region45
    $region44: #{cnn_residual_attention.1} parent=1 // pred_region
      _
    $region45: #{cnn_residual_attention.1} parent=1 // pred_fallthru
      _
    // Predicated region
    $region46: #{cnn_residual_attention.1} parent=1 // pred_check
      _
    $region47: #{cnn_residual_attention.1} parent=1 // pred_check_branch
      %100 = sbr.rel (0) target = $region49
    $region48: #{cnn_residual_attention.1} parent=1 // pred_region
      _
    $region49: #{cnn_residual_attention.1} parent=1 // pred_fallthru
      _
    // Predicated region
    $region50: #{cnn_residual_attention.1} parent=1 // pred_check
      _
    $region51: #{cnn_residual_attention.1} parent=1 // pred_check_branch
      %102 = sbr.rel (0) target = $region53
    $region52: #{cnn_residual_attention.1} parent=1 // pred_region
      _
    $region53: #{cnn_residual_attention.1} parent=1 // pred_fallthru
      _
    // Predicated region
    $region54: #{cnn_residual_attention.1} parent=1 // pred_check
      _
    $region55: #{cnn_residual_attention.1} parent=1 // pred_check_branch
      %104 = sbr.rel (0) target = $region57
    $region56: #{cnn_residual_attention.1} parent=1 // pred_region
      _
    $region57: #{cnn_residual_attention.1} parent=1 // pred_fallthru
      _
    // Predicated region
    $region58: #{cnn_residual_attention.1} parent=1 // pred_check
      _
    $region59: #{cnn_residual_attention.1} parent=1 // pred_check_branch
      %106 = sbr.rel (0) target = $region61
    $region60: #{cnn_residual_attention.1} parent=1 // pred_region
      _
    $region61: #{cnn_residual_attention.1} parent=1 // pred_fallthru
      _
    // Predicated region
    $region62: #{cnn_residual_attention.1} parent=1 // pred_check
      _
    $region63: #{cnn_residual_attention.1} parent=1 // pred_check_branch
      %108 = sbr.rel (0) target = $region65
    $region64: #{cnn_residual_attention.1} parent=1 // pred_region
      _
    $region65: #{cnn_residual_attention.1} parent=1 // pred_fallthru
      _
    // Predicated region
    $region66: #{cnn_residual_attention.1} parent=1 // pred_check
      _
    $region67: #{cnn_residual_attention.1} parent=1 // pred_check_branch
      %110 = sbr.rel (0) target = $region69
    $region68: #{cnn_residual_attention.1} parent=1 // pred_region
      _
    $region69: #{cnn_residual_attention.1} parent=1 // pred_fallthru
      _
    // Predicated region
    $region70: #{cnn_residual_attention.1} parent=1 // pred_check
      _
    $region71: #{cnn_residual_attention.1} parent=1 // pred_check_branch
      %112 = sbr.rel (0) target = $region73
    $region72: #{cnn_residual_attention.1} parent=1 // pred_region
      _
    $region73: #{cnn_residual_attention.1} parent=1 // pred_fallthru
      _
    // Predicated region
    $region74: #{cnn_residual_attention.1} parent=1 // pred_check
      _
    $region75: #{cnn_residual_attention.1} parent=1 // pred_check_branch
      %114 = sbr.rel (0) target = $region77
    $region76: #{cnn_residual_attention.1} parent=1 // pred_region
      _
    $region77: #{cnn_residual_attention.1} parent=1 // pred_fallthru
      _
    // Predicated region
    $region78: #{cnn_residual_attention.1} parent=1 // pred_check
      _
    $region79: #{cnn_residual_attention.1} parent=1 // pred_check_branch
      %116 = sbr.rel (0) target = $region81
    $region80: #{cnn_residual_attention.1} parent=1 // pred_region
      _
    $region81: #{cnn_residual_attention.1} parent=1 // pred_fallthru
      _
    // Predicated region
    $region82: #{cnn_residual_attention.1} parent=1 // pred_check
      _
    $region83: #{cnn_residual_attention.1} parent=1 // pred_check_branch
      %118 = sbr.rel (0) target = $region85
    $region84: #{cnn_residual_attention.1} parent=1 // pred_region
      _
    $region85: #{cnn_residual_attention.1} parent=1 // pred_fallthru
      _
    // Predicated region
    $region86: #{cnn_residual_attention.1} parent=1 // pred_check
      _
    $region87: #{cnn_residual_attention.1} parent=1 // pred_check_branch
      %120 = sbr.rel (0) target = $region89
    $region88: #{cnn_residual_attention.1} parent=1 // pred_region
      _
    $region89: #{cnn_residual_attention.1} parent=1 // pred_fallthru
      _
    // Predicated region
    $region90: #{cnn_residual_attention.1} parent=1 // pred_check
      _
    $region91: #{cnn_residual_attention.1} parent=1 // pred_check_branch
      %122 = sbr.rel (0) target = $region93
    $region92: #{cnn_residual_attention.1} parent=1 // pred_region
      _
    $region93: #{cnn_residual_attention.1} parent=1 // pred_fallthru
      _
    // Predicated region
    $region94: #{cnn_residual_attention.1} parent=1 // pred_check
      _
    $region95: #{cnn_residual_attention.1} parent=1 // pred_check_branch
      %124 = sbr.rel (0) target = $region97
    $region96: #{cnn_residual_attention.1} parent=1 // pred_region
      _
    $region97: #{cnn_residual_attention.1} parent=1 // pred_fallthru
      _
    // Predicated region
    $region98: #{cnn_residual_attention.1} parent=1 // pred_check
      _
    $region99: #{cnn_residual_attention.1} parent=1 // pred_check_branch
      %126 = sbr.rel (0) target = $region101
    $region100: #{cnn_residual_attention.1} parent=1 // pred_region
      _
    $region101: #{cnn_residual_attention.1} parent=1 // pred_fallthru
      _
    // Predicated region
    $region102: #{cnn_residual_attention.1} parent=1 // pred_check
      _
    $region103: #{cnn_residual_attention.1} parent=1 // pred_check_branch
      %128 = sbr.rel (0) target = $region105
    $region104: #{cnn_residual_attention.1} parent=1 // pred_region
      _
    $region105: #{cnn_residual_attention.1} parent=1 // pred_fallthru
      _
    // Predicated region
    $region106: #{cnn_residual_attention.1} parent=1 // pred_check
      _
    $region107: #{cnn_residual_attention.1} parent=1 // pred_check_branch
      %130 = sbr.rel (0) target = $region109
    $region108: #{cnn_residual_attention.1} parent=1 // pred_region
      _
    $region109: #{cnn_residual_attention.1} parent=1 // pred_fallthru
      _
    // Predicated region
    $region110: #{cnn_residual_attention.1} parent=1 // pred_check
      _
    $region111: #{cnn_residual_attention.1} parent=1 // pred_check_branch
      %132 = sbr.rel (0) target = $region113
    $region112: #{cnn_residual_attention.1} parent=1 // pred_region
      _
    $region113: #{cnn_residual_attention.1} parent=1 // pred_fallthru
      _
    // Predicated region
    $region114: #{cnn_residual_attention.1} parent=1 // pred_check
      _
    $region115: #{cnn_residual_attention.1} parent=1 // pred_check_branch
      %134 = sbr.rel (0) target = $region117
    $region116: #{cnn_residual_attention.1} parent=1 // pred_region
      _
    $region117: #{cnn_residual_attention.1} parent=1 // pred_fallthru
      _
    // Predicated region
    $region118: #{cnn_residual_attention.1} parent=1 // pred_check
      _
    $region119: #{cnn_residual_attention.1} parent=1 // pred_check_branch
      %136 = sbr.rel (0) target = $region121
    $region120: #{cnn_residual_attention.1} parent=1 // pred_region
      _
    $region121: #{cnn_residual_attention.1} parent=1 // pred_fallthru
      _
    // Predicated region
    $region122: #{cnn_residual_attention.1} parent=1 // pred_check
      _
    $region123: #{cnn_residual_attention.1} parent=1 // pred_check_branch
      %138 = sbr.rel (0) target = $region125
    $region124: #{cnn_residual_attention.1} parent=1 // pred_region
      _
    $region125: #{cnn_residual_attention.1} parent=1 // pred_fallthru
      _
    // Predicated region
    $region126: #{cnn_residual_attention.1} parent=1 // pred_check
      _
    $region127: #{cnn_residual_attention.1} parent=1 // pred_check_branch
      %140 = sbr.rel (0) target = $region129
    $region128: #{cnn_residual_attention.1} parent=1 // pred_region
      _
    $region129: #{cnn_residual_attention.1} parent=1 // pred_fallthru
      _
    // Predicated region
    $region130: #{cnn_residual_attention.1} parent=1 // pred_check
      _
    $region131: #{cnn_residual_attention.1} parent=1 // pred_check_branch
      %142 = sbr.rel (0) target = $region133
    $region132: #{cnn_residual_attention.1} parent=1 // pred_region
      _
    $region133: #{cnn_residual_attention.1} parent=1 // pred_fallthru
      _
    // Predicated region
    $region134: #{cnn_residual_attention.1} parent=1 // pred_check
      _
    $region135: #{cnn_residual_attention.1} parent=1 // pred_check_branch
      %144 = sbr.rel (0) target = $region137
    $region136: #{cnn_residual_attention.1} parent=1 // pred_region
      _
    $region137: #{cnn_residual_attention.1} parent=1 // pred_fallthru
      _
    // Predicated region
    $region138: #{cnn_residual_attention.1} parent=1 // pred_check
      _
    $region139: #{cnn_residual_attention.1} parent=1 // pred_check_branch
      %146 = sbr.rel (0) target = $region141
    $region140: #{cnn_residual_attention.1} parent=1 // pred_region
      _
    $region141: #{cnn_residual_attention.1} parent=1 // pred_fallthru
      _
    %v147 = vld [vmem:[%s3] sm:$0xff]
    %v148 = vld [vmem:[%s3 + $0x8] sm:$0xff]
    %v149 = vld [vmem:[%s3 + $0x10] sm:$0xff]
    %v150 = vld [vmem:[%s3 + $0x18] sm:$0xff]
    %v151 = vld [vmem:[%s5] sm:$0xff]
    %v152 = vld [vmem:[%s5 + $0x8] sm:$0xff]
    %v153 = vld [vmem:[%s5 + $0x10] sm:$0xff]
    %v154 = vld [vmem:[%s5 + $0x18] sm:$0xff]
    %v155 = vld [vmem:[%s1] sm:$0xff]
    %v156 = vld [vmem:[%s1 + $0x8] sm:$0xff]
    %v157 = vld [vmem:[%s1 + $0x10] sm:$0xff]
    %v158 = vld [vmem:[%s1 + $0x18] sm:$0xff]
    %v159 = vrot.slane %v155, 7
    %v160 = vrot.slane %v156, 7
    %v161 = vrot.slane %v157, 7
    %v162 = vrot.slane %v158, 7
    %v163 = vlaneseq
    %v164 = vshrl.u32 %v163, 7
    %vm165 = vcmp.lt.s32.totalorder %v164, 1
    %v166 = vsel %vm165, %v161, %v162
    %v167 = vsel %vm165, %v160, %v161
    %v168 = vsel %vm165, %v159, %v160
    %v169 = vsel %vm165, %v162, %v159
    %171 = vset.pattern.permute.xlu0 0
    %172 = vperm.xlu0 %171, %v147
    %v173 = vpop.permute.xlu0 %172
    %176 = vset.pattern.permute.xlu0 0
    %177 = vperm.xlu0 %176, %v148
    %v178 = vpop.permute.xlu0 %177
    %181 = vset.pattern.permute.xlu0 0
    %182 = vperm.xlu0 %181, %v149
    %v183 = vpop.permute.xlu0 %182
    %186 = vset.pattern.permute.xlu0 0
    %187 = vperm.xlu0 %186, %v150
    %v188 = vpop.permute.xlu0 %187
    %v190 = vmul.f32 %v169, %v173
    %v191 = vmul.f32 %v168, %v178
    %v192 = vmul.f32 %v167, %v183
    %v193 = vmul.f32 %v166, %v188
    %v194 = vrot.slane %v155, 1
    %v195 = vrot.slane %v156, 1
    %v196 = vrot.slane %v157, 1
    %v197 = vrot.slane %v158, 1
    %vm198 = vcmp.lt.s32.totalorder %v164, 7
    %v199 = vsel %vm198, %v196, %v197
    %v200 = vsel %vm198, %v195, %v196
    %v201 = vsel %vm198, %v194, %v195
    %v202 = vsel %vm198, %v197, %v194
    %204 = vset.pattern.permute.xlu0 0
    %205 = vperm.xlu0 %204, %v151
    %v206 = vpop.permute.xlu0 %205
    %209 = vset.pattern.permute.xlu0 0
    %210 = vperm.xlu0 %209, %v152
    %v211 = vpop.permute.xlu0 %210
    %214 = vset.pattern.permute.xlu0 0
    %215 = vperm.xlu0 %214, %v153
    %v216 = vpop.permute.xlu0 %215
    %219 = vset.pattern.permute.xlu0 0
    %220 = vperm.xlu0 %219, %v154
    %v221 = vpop.permute.xlu0 %220
    %v223 = vmul.f32 %v201, %v206
    %v224 = vmul.f32 %v200, %v211
    %v225 = vmul.f32 %v199, %v216
    %v226 = vmul.f32 %v202, %v221
    %231 = vrot.lane.b32.xlu0 %v155, 4
    %v232 = vpop.permute.xlu0 %231
    %233 = vrot.lane.b32.xlu0 %v156, 4
    %v234 = vpop.permute.xlu0 %233
    %235 = vrot.lane.b32.xlu0 %v157, 4
    %v236 = vpop.permute.xlu0 %235
    %237 = vrot.lane.b32.xlu0 %v158, 4
    %v238 = vpop.permute.xlu0 %237
    %247 = vrot.lane.b32.xlu0 %v223, 8
    %v248 = vpop.permute.xlu0 %247
    %249 = vrot.lane.b32.xlu0 %v224, 8
    %v250 = vpop.permute.xlu0 %249
    %251 = vrot.lane.b32.xlu0 %v225, 8
    %v252 = vpop.permute.xlu0 %251
    %253 = vrot.lane.b32.xlu0 %v226, 8
    %v254 = vpop.permute.xlu0 %253
    %vm259 = vcmask 31744
    %v260 = vsel %vm259, %v190, %v232
    %v261 = vsel %vm259, %v191, %v234
    %v262 = vsel %vm259, %v192, %v236
    %v263 = vsel %vm259, %v193, %v238
    %vm264 = vcmask 64512
    %v265 = vsel %vm264, %v260, %v248
    %v266 = vsel %vm264, %v261, %v250
    %v267 = vsel %vm264, %v262, %v252
    %v268 = vsel %vm264, %v263, %v254
    %v269 = vld [vmem:[%s7] sm:$0xff]
    %v270 = vld [vmem:[%s7 + $0x8] sm:$0xf]
    %v271 = vld [vmem:[%s9] sm:$0x1]
    %v273 = vlaneseq
    %v274 = vshrl.u32 %v273, 7
    %v275 = vsub.s32 0, %v274
    %v276 = vrot.slane %v271, %v275
    %vm278 = vcmask 97280
    %v280 = vsel %vm278, %v265, 0
    %v283 = vsel %vm278, %v266, 0
    %v286 = vsel %vm278, %v267, 0
    %v289 = vsel %vm278, %v268, 0
    %vm291 = vcmask 1043456
    %v293 = vsel %vm291, %v270, 0
    %295 = vmatprep.subr.mxu0 0.0
    %296 = vmatpush1.msra.mxu0 %v269
    %297 = vmatprep.subr.mxu0 0.0
    %298 = vmatpush1.msra.mxu0 %v293
    %299 = vmatprep.subr.mxu0 0.0
    %300 = vmatpush1.msra.mxu0 0.0
    %301 = vmatprep.subr.mxu0 0.0
    %302 = vmatpush1.msra.mxu0 0.0
    %303 = vmatprep.subr.mxu0 0.0
    %304 = vmatpush1.msra.mxu0 0.0
    %305 = vmatprep.subr.mxu0 0.0
    %306 = vmatpush1.msra.mxu0 0.0
    %307 = vmatprep.subr.mxu0 0.0
    %308 = vmatpush1.msra.mxu0 0.0
    %309 = vmatprep.subr.mxu0 0.0
    %310 = vmatpush1.msra.mxu0 0.0
    %311 = vmatprep.subr.mxu0 0.0
    %312 = vmatpush1.msra.mxu0 0.0
    %313 = vmatprep.subr.mxu0 0.0
    %314 = vmatpush1.msra.mxu0 0.0
    %315 = vmatprep.subr.mxu0 0.0
    %316 = vmatpush1.msra.mxu0 0.0
    %317 = vmatprep.subr.mxu0 0.0
    %318 = vmatpush1.msra.mxu0 0.0
    %319 = vmatprep.subr.mxu0 0.0
    %320 = vmatpush1.msra.mxu0 0.0
    %321 = vmatprep.subr.mxu0 0.0
    %322 = vmatpush1.msra.mxu0 0.0
    %323 = vmatprep.subr.mxu0 0.0
    %324 = vmatpush1.msra.mxu0 0.0
    %325 = vmatprep.subr.mxu0 0.0
    %326 = vmatpush1.msra.mxu0 0.0
    %327 = vmatprep.subr.mxu0 0.0
    %328 = vmatpush1.msra.mxu0 0.0
    %329 = vmatprep.subr.mxu0 0.0
    %330 = vmatpush1.msra.mxu0 0.0
    %331 = vmatprep.subr.mxu0 0.0
    %332 = vmatpush1.msra.mxu0 0.0
    %333 = vmatprep.subr.mxu0 0.0
    %334 = vmatpush1.msra.mxu0 0.0
    %335 = vmatprep.subr.mxu0 0.0
    %336 = vmatpush1.msra.mxu0 0.0
    %337 = vmatprep.subr.mxu0 0.0
    %338 = vmatpush1.msra.mxu0 0.0
    %339 = vmatprep.subr.mxu0 0.0
    %340 = vmatpush1.msra.mxu0 0.0
    %341 = vmatprep.subr.mxu0 0.0
    %342 = vmatpush1.msra.mxu0 0.0
    %343 = vmatprep.subr.mxu0 0.0
    %344 = vmatpush1.msra.mxu0 0.0
    %345 = vmatprep.subr.mxu0 0.0
    %346 = vmatpush1.msra.mxu0 0.0
    %347 = vmatprep.subr.mxu0 0.0
    %348 = vmatpush1.msra.mxu0 0.0
    %349 = vmatprep.subr.mxu0 0.0
    %350 = vmatpush1.msra.mxu0 0.0
    %351 = vmatprep.subr.mxu0 0.0
    %352 = vmatpush1.msra.mxu0 0.0
    %353 = vmatprep.subr.mxu0 0.0
    %354 = vmatpush1.msra.mxu0 0.0
    %355 = vmatprep.subr.mxu0 0.0
    %356 = vmatpush1.msra.mxu0 0.0
    %357 = vmatprep.subr.mxu0 0.0
    %358 = vmatpush1.msra.mxu0 0.0
    %359 = vmatprep.mubr.f32.mxu0 0.0
    %360 = vmatmul.mubr.f32.gmra.mrb[0].mxu0 %v280
    %v361 = vpop.f32.mrb[0].mxu0
    %v362 = vadd.f32 %v276, %v361
    %v363 = vpop.f32.mrb[0].mxu0
    %364 = vmatprep.mubr.f32.mxu0 0.0
    %365 = vmatmul.mubr.f32.gmra.mrb[0].mxu0 %v283
    %v366 = vpop.f32.mrb[0].mxu0
    %v367 = vadd.f32 %v276, %v366
    %v368 = vpop.f32.mrb[0].mxu0
    %369 = vmatprep.mubr.f32.mxu0 0.0
    %370 = vmatmul.mubr.f32.gmra.mrb[0].mxu0 %v286
    %v371 = vpop.f32.mrb[0].mxu0
    %v372 = vadd.f32 %v276, %v371
    %v373 = vpop.f32.mrb[0].mxu0
    %374 = vmatprep.mubr.f32.mxu0 0.0
    %375 = vmatmul.mubr.f32.gmra.mrb[0].mxu0 %v289
    %v376 = vpop.f32.mrb[0].mxu0
    %v377 = vadd.f32 %v276, %v376
    %v378 = vpop.f32.mrb[0].mxu0
    %379 = vdwg.mxu0
    %v380 = vsel %vm264, %v362, 0.0
    %v381 = vsel %vm264, %v367, 0.0
    %v382 = vadd.f32 %v380, %v381
    %v383 = vsel %vm264, %v372, 0.0
    %v384 = vadd.f32 %v382, %v383
    %v385 = vsel %vm264, %v377, 0.0
    %v386 = vadd.f32 %v384, %v385
    %v387 = vrot.slane %v386, 4
    %v388 = vadd.f32 %v386, %v387
    %v389 = vrot.slane %v388, 2
    %v390 = vadd.f32 %v388, %v389
    %v391 = vrot.slane %v390, 1
    %v392 = vadd.f32 %v390, %v391
    %v393 = vmul.f32 %v392, 0.03125
    %v394 = vmul.f32 %v362, %v362
    %v395 = vmul.f32 %v367, %v367
    %v396 = vmul.f32 %v372, %v372
    %v397 = vmul.f32 %v377, %v377
    %v398 = vsel %vm264, %v394, 0.0
    %v399 = vsel %vm264, %v395, 0.0
    %v400 = vadd.f32 %v398, %v399
    %v401 = vsel %vm264, %v396, 0.0
    %v402 = vadd.f32 %v400, %v401
    %v403 = vsel %vm264, %v397, 0.0
    %v404 = vadd.f32 %v402, %v403
    %v405 = vrot.slane %v404, 4
    %v406 = vadd.f32 %v404, %v405
    %v407 = vrot.slane %v406, 2
    %v408 = vadd.f32 %v406, %v407
    %v409 = vrot.slane %v408, 1
    %v410 = vadd.f32 %v408, %v409
    %v411 = vmul.f32 %v410, 0.03125
    %v412 = vmul.f32 %v393, %v393
    %v413 = vsub.f32 %v411, %v412
    %v414 = vld [vmem:[%s11] sm:$0x1]
    %v415 = vmax.f32 %v413, 0.0
    %v416 = vadd.f32 %v415, 1e-05
    %v417 = vrsqrt.pop %v416
    %v418 = vmul.f32 %v414, %v417
    %v420 = vlaneseq
    %v421 = vshrl.u32 %v420, 7
    %v422 = vsub.s32 0, %v421
    %v423 = vrot.slane %v418, %v422
    %v425 = vmul.f32 %v362, %v423
    %v426 = vmul.f32 %v367, %v423
    %v427 = vmul.f32 %v372, %v423
    %v428 = vmul.f32 %v377, %v423
    %v429 = vld [vmem:[%s13] sm:$0x1]
    %v430 = vmul.f32 %v393, %v418
    %v431 = vsub.f32 %v429, %v430
    %v433 = vlaneseq
    %v434 = vshrl.u32 %v433, 7
    %v435 = vsub.s32 0, %v434
    %v436 = vrot.slane %v431, %v435
    %v438 = vadd.f32 %v425, %v436
    %v439 = vadd.f32 %v426, %v436
    %v440 = vadd.f32 %v427, %v436
    %v441 = vadd.f32 %v428, %v436
    %v442 = vmax.f32 %v438, 0.0
    %v443 = vmax.f32 %v439, 0.0
    %v444 = vmax.f32 %v440, 0.0
    %v445 = vmax.f32 %v441, 0.0
    %v446 = vrot.slane %v442, 7
    %v447 = vrot.slane %v443, 7
    %v448 = vrot.slane %v444, 7
    %v449 = vrot.slane %v445, 7
    %v450 = vsel %vm165, %v448, %v449
    %v451 = vsel %vm165, %v447, %v448
    %v452 = vsel %vm165, %v446, %v447
    %v453 = vsel %vm165, %v449, %v446
    %v454 = vmul.f32 %v453, %v173
    %v455 = vmul.f32 %v452, %v178
    %v456 = vmul.f32 %v451, %v183
    %v457 = vmul.f32 %v450, %v188
    %v458 = vrot.slane %v442, 1
    %v459 = vrot.slane %v443, 1
    %v460 = vrot.slane %v444, 1
    %v461 = vrot.slane %v445, 1
    %v462 = vsel %vm198, %v460, %v461
    %v463 = vsel %vm198, %v459, %v460
    %v464 = vsel %vm198, %v458, %v459
    %v465 = vsel %vm198, %v461, %v458
    %v466 = vmul.f32 %v464, %v206
    %v467 = vmul.f32 %v463, %v211
    %v468 = vmul.f32 %v462, %v216
    %v469 = vmul.f32 %v465, %v221
    %474 = vrot.lane.b32.xlu0 %v442, 8
    %v475 = vpop.permute.xlu0 %474
    %476 = vrot.lane.b32.xlu0 %v443, 8
    %v477 = vpop.permute.xlu0 %476
    %478 = vrot.lane.b32.xlu0 %v444, 8
    %v479 = vpop.permute.xlu0 %478
    %480 = vrot.lane.b32.xlu0 %v445, 8
    %v481 = vpop.permute.xlu0 %480
    %490 = vrot.lane.b32.xlu0 %v466, 16
    %v491 = vpop.permute.xlu0 %490
    %492 = vrot.lane.b32.xlu0 %v467, 16
    %v493 = vpop.permute.xlu0 %492
    %494 = vrot.lane.b32.xlu0 %v468, 16
    %v495 = vpop.permute.xlu0 %494
    %496 = vrot.lane.b32.xlu0 %v469, 16
    %v497 = vpop.permute.xlu0 %496
    %v502 = vsel %vm264, %v454, %v475
    %v503 = vsel %vm264, %v455, %v477
    %v504 = vsel %vm264, %v456, %v479
    %v505 = vsel %vm264, %v457, %v481
    %vm506 = vcmask 130048
    %v507 = vsel %vm506, %v502, %v491
    %v508 = vsel %vm506, %v503, %v493
    %v509 = vsel %vm506, %v504, %v495
    %v510 = vsel %vm506, %v505, %v497
    %v511 = vld [vmem:[%s15] sm:$0xff]
    %v512 = vld [vmem:[%s15 + $0x8] sm:$0xff]
    %v513 = vld [vmem:[%s15 + $0x10] sm:$0xff]
    %v514 = vld [vmem:[%s17] sm:$0x1]
    %v516 = vlaneseq
    %v517 = vshrl.u32 %v516, 7
    %v518 = vsub.s32 0, %v517
    %v519 = vrot.slane %v514, %v518
    %vm521 = vcmask 195584
    %v523 = vsel %vm521, %v507, 0
    %v526 = vsel %vm521, %v508, 0
    %v529 = vsel %vm521, %v509, 0
    %v532 = vsel %vm521, %v510, 0
    %534 = vmatprep.subr.mxu0 0.0
    %535 = vmatpush1.msra.mxu0 %v511
    %536 = vmatprep.subr.mxu0 0.0
    %537 = vmatpush1.msra.mxu0 %v512
    %538 = vmatprep.subr.mxu0 0.0
    %539 = vmatpush1.msra.mxu0 %v513
    %540 = vmatprep.subr.mxu0 0.0
    %541 = vmatpush1.msra.mxu0 0.0
    %542 = vmatprep.subr.mxu0 0.0
    %543 = vmatpush1.msra.mxu0 0.0
    %544 = vmatprep.subr.mxu0 0.0
    %545 = vmatpush1.msra.mxu0 0.0
    %546 = vmatprep.subr.mxu0 0.0
    %547 = vmatpush1.msra.mxu0 0.0
    %548 = vmatprep.subr.mxu0 0.0
    %549 = vmatpush1.msra.mxu0 0.0
    %550 = vmatprep.subr.mxu0 0.0
    %551 = vmatpush1.msra.mxu0 0.0
    %552 = vmatprep.subr.mxu0 0.0
    %553 = vmatpush1.msra.mxu0 0.0
    %554 = vmatprep.subr.mxu0 0.0
    %555 = vmatpush1.msra.mxu0 0.0
    %556 = vmatprep.subr.mxu0 0.0
    %557 = vmatpush1.msra.mxu0 0.0
    %558 = vmatprep.subr.mxu0 0.0
    %559 = vmatpush1.msra.mxu0 0.0
    %560 = vmatprep.subr.mxu0 0.0
    %561 = vmatpush1.msra.mxu0 0.0
    %562 = vmatprep.subr.mxu0 0.0
    %563 = vmatpush1.msra.mxu0 0.0
    %564 = vmatprep.subr.mxu0 0.0
    %565 = vmatpush1.msra.mxu0 0.0
    %566 = vmatprep.subr.mxu0 0.0
    %567 = vmatpush1.msra.mxu0 0.0
    %568 = vmatprep.subr.mxu0 0.0
    %569 = vmatpush1.msra.mxu0 0.0
    %570 = vmatprep.subr.mxu0 0.0
    %571 = vmatpush1.msra.mxu0 0.0
    %572 = vmatprep.subr.mxu0 0.0
    %573 = vmatpush1.msra.mxu0 0.0
    %574 = vmatprep.subr.mxu0 0.0
    %575 = vmatpush1.msra.mxu0 0.0
    %576 = vmatprep.subr.mxu0 0.0
    %577 = vmatpush1.msra.mxu0 0.0
    %578 = vmatprep.subr.mxu0 0.0
    %579 = vmatpush1.msra.mxu0 0.0
    %580 = vmatprep.subr.mxu0 0.0
    %581 = vmatpush1.msra.mxu0 0.0
    %582 = vmatprep.subr.mxu0 0.0
    %583 = vmatpush1.msra.mxu0 0.0
    %584 = vmatprep.subr.mxu0 0.0
    %585 = vmatpush1.msra.mxu0 0.0
    %586 = vmatprep.subr.mxu0 0.0
    %587 = vmatpush1.msra.mxu0 0.0
    %588 = vmatprep.subr.mxu0 0.0
    %589 = vmatpush1.msra.mxu0 0.0
    %590 = vmatprep.subr.mxu0 0.0
    %591 = vmatpush1.msra.mxu0 0.0
    %592 = vmatprep.subr.mxu0 0.0
    %593 = vmatpush1.msra.mxu0 0.0
    %594 = vmatprep.subr.mxu0 0.0
    %595 = vmatpush1.msra.mxu0 0.0
    %596 = vmatprep.subr.mxu0 0.0
    %597 = vmatpush1.msra.mxu0 0.0
    %598 = vmatprep.mubr.f32.mxu0 0.0
    %599 = vmatmul.mubr.f32.gmra.mrb[0].mxu0 %v523
    %v600 = vpop.f32.mrb[0].mxu0
    %v601 = vadd.f32 %v519, %v600
    %v602 = vpop.f32.mrb[0].mxu0
    %603 = vmatprep.mubr.f32.mxu0 0.0
    %604 = vmatmul.mubr.f32.gmra.mrb[0].mxu0 %v526
    %v605 = vpop.f32.mrb[0].mxu0
    %v606 = vadd.f32 %v519, %v605
    %v607 = vpop.f32.mrb[0].mxu0
    %608 = vmatprep.mubr.f32.mxu0 0.0
    %609 = vmatmul.mubr.f32.gmra.mrb[0].mxu0 %v529
    %v610 = vpop.f32.mrb[0].mxu0
    %v611 = vadd.f32 %v519, %v610
    %v612 = vpop.f32.mrb[0].mxu0
    %613 = vmatprep.mubr.f32.mxu0 0.0
    %614 = vmatmul.mubr.f32.gmra.mrb[0].mxu0 %v532
    %v615 = vpop.f32.mrb[0].mxu0
    %v616 = vadd.f32 %v519, %v615
    %v617 = vpop.f32.mrb[0].mxu0
    %618 = vdwg.mxu0
    %v619 = vsel %vm264, %v601, 0.0
    %v620 = vsel %vm264, %v606, 0.0
    %v621 = vadd.f32 %v619, %v620
    %v622 = vsel %vm264, %v611, 0.0
    %v623 = vadd.f32 %v621, %v622
    %v624 = vsel %vm264, %v616, 0.0
    %v625 = vadd.f32 %v623, %v624
    %v626 = vrot.slane %v625, 4
    %v627 = vadd.f32 %v625, %v626
    %v628 = vrot.slane %v627, 2
    %v629 = vadd.f32 %v627, %v628
    %v630 = vrot.slane %v629, 1
    %v631 = vadd.f32 %v629, %v630
    %v632 = vmul.f32 %v631, 0.03125
    %v633 = vmul.f32 %v601, %v601
    %v634 = vmul.f32 %v606, %v606
    %v635 = vmul.f32 %v611, %v611
    %v636 = vmul.f32 %v616, %v616
    %v637 = vsel %vm264, %v633, 0.0
    %v638 = vsel %vm264, %v634, 0.0
    %v639 = vadd.f32 %v637, %v638
    %v640 = vsel %vm264, %v635, 0.0
    %v641 = vadd.f32 %v639, %v640
    %v642 = vsel %vm264, %v636, 0.0
    %v643 = vadd.f32 %v641, %v642
    %v644 = vrot.slane %v643, 4
    %v645 = vadd.f32 %v643, %v644
    %v646 = vrot.slane %v645, 2
    %v647 = vadd.f32 %v645, %v646
    %v648 = vrot.slane %v647, 1
    %v649 = vadd.f32 %v647, %v648
    %v650 = vmul.f32 %v649, 0.03125
    %v651 = vmul.f32 %v632, %v632
    %v652 = vsub.f32 %v650, %v651
    %v653 = vld [vmem:[%s19] sm:$0x1]
    %v654 = vmax.f32 %v652, 0.0
    %v655 = vadd.f32 %v654, 1e-05
    %v656 = vrsqrt.pop %v655
    %v657 = vmul.f32 %v653, %v656
    %v659 = vlaneseq
    %v660 = vshrl.u32 %v659, 7
    %v661 = vsub.s32 0, %v660
    %v662 = vrot.slane %v657, %v661
    %v664 = vmul.f32 %v601, %v662
    %v665 = vmul.f32 %v606, %v662
    %v666 = vmul.f32 %v611, %v662
    %v667 = vmul.f32 %v616, %v662
    %v668 = vld [vmem:[%s21] sm:$0x1]
    %v669 = vmul.f32 %v632, %v657
    %v670 = vsub.f32 %v668, %v669
    %v672 = vlaneseq
    %v673 = vshrl.u32 %v672, 7
    %v674 = vsub.s32 0, %v673
    %v675 = vrot.slane %v670, %v674
    %v677 = vadd.f32 %v664, %v675
    %v678 = vadd.f32 %v665, %v675
    %v679 = vadd.f32 %v666, %v675
    %v680 = vadd.f32 %v667, %v675
    %685 = vrot.lane.b32.xlu0 %v362, 120
    %v686 = vpop.permute.xlu0 %685
    %687 = vrot.lane.b32.xlu0 %v367, 120
    %v688 = vpop.permute.xlu0 %687
    %689 = vrot.lane.b32.xlu0 %v372, 120
    %v690 = vpop.permute.xlu0 %689
    %691 = vrot.lane.b32.xlu0 %v377, 120
    %v692 = vpop.permute.xlu0 %691
    %v697 = vadd.f32 %v677, %v686
    %v698 = vadd.f32 %v678, %v688
    %v699 = vadd.f32 %v679, %v690
    %v700 = vadd.f32 %v680, %v692
    %v701 = vmax.f32 %v697, 0.0
    %v702 = vmax.f32 %v698, 0.0
    %v703 = vmax.f32 %v699, 0.0
    %v704 = vmax.f32 %v700, 0.0
    %v705 = vrot.slane %v701, 7
    %v706 = vrot.slane %v702, 7
    %v707 = vrot.slane %v703, 7
    %v708 = vrot.slane %v704, 7
    %v709 = vsel %vm165, %v707, %v708
    %v710 = vsel %vm165, %v706, %v707
    %v711 = vsel %vm165, %v705, %v706
    %v712 = vsel %vm165, %v708, %v705
    %v713 = vmul.f32 %v712, %v173
    %v714 = vmul.f32 %v711, %v178
    %v715 = vmul.f32 %v710, %v183
    %v716 = vmul.f32 %v709, %v188
    %v717 = vrot.slane %v701, 1
    %v718 = vrot.slane %v702, 1
    %v719 = vrot.slane %v703, 1
    %v720 = vrot.slane %v704, 1
    %v721 = vsel %vm198, %v719, %v720
    %v722 = vsel %vm198, %v718, %v719
    %v723 = vsel %vm198, %v717, %v718
    %v724 = vsel %vm198, %v720, %v717
    %v725 = vmul.f32 %v723, %v206
    %v726 = vmul.f32 %v722, %v211
    %v727 = vmul.f32 %v721, %v216
    %v728 = vmul.f32 %v724, %v221
    %733 = vrot.lane.b32.xlu0 %v701, 8
    %v734 = vpop.permute.xlu0 %733
    %735 = vrot.lane.b32.xlu0 %v702, 8
    %v736 = vpop.permute.xlu0 %735
    %737 = vrot.lane.b32.xlu0 %v703, 8
    %v738 = vpop.permute.xlu0 %737
    %739 = vrot.lane.b32.xlu0 %v704, 8
    %v740 = vpop.permute.xlu0 %739
    %749 = vrot.lane.b32.xlu0 %v725, 16
    %v750 = vpop.permute.xlu0 %749
    %751 = vrot.lane.b32.xlu0 %v726, 16
    %v752 = vpop.permute.xlu0 %751
    %753 = vrot.lane.b32.xlu0 %v727, 16
    %v754 = vpop.permute.xlu0 %753
    %755 = vrot.lane.b32.xlu0 %v728, 16
    %v756 = vpop.permute.xlu0 %755
    %v761 = vsel %vm264, %v713, %v734
    %v762 = vsel %vm264, %v714, %v736
    %v763 = vsel %vm264, %v715, %v738
    %v764 = vsel %vm264, %v716, %v740
    %v765 = vsel %vm506, %v761, %v750
    %v766 = vsel %vm506, %v762, %v752
    %v767 = vsel %vm506, %v763, %v754
    %v768 = vsel %vm506, %v764, %v756
    %v769 = vld [vmem:[%s23] sm:$0xff]
    %v770 = vld [vmem:[%s23 + $0x8] sm:$0xff]
    %v771 = vld [vmem:[%s23 + $0x10] sm:$0xff]
    %v772 = vld [vmem:[%s25] sm:$0x1]
    %v774 = vlaneseq
    %v775 = vshrl.u32 %v774, 7
    %v776 = vsub.s32 0, %v775
    %v777 = vrot.slane %v772, %v776
    %v780 = vsel %vm521, %v765, 0
    %v783 = vsel %vm521, %v766, 0
    %v786 = vsel %vm521, %v767, 0
    %v789 = vsel %vm521, %v768, 0
    %791 = vmatprep.subr.mxu0 0.0
    %792 = vmatpush1.msra.mxu0 %v769
    %793 = vmatprep.subr.mxu0 0.0
    %794 = vmatpush1.msra.mxu0 %v770
    %795 = vmatprep.subr.mxu0 0.0
    %796 = vmatpush1.msra.mxu0 %v771
    %797 = vmatprep.subr.mxu0 0.0
    %798 = vmatpush1.msra.mxu0 0.0
    %799 = vmatprep.subr.mxu0 0.0
    %800 = vmatpush1.msra.mxu0 0.0
    %801 = vmatprep.subr.mxu0 0.0
    %802 = vmatpush1.msra.mxu0 0.0
    %803 = vmatprep.subr.mxu0 0.0
    %804 = vmatpush1.msra.mxu0 0.0
    %805 = vmatprep.subr.mxu0 0.0
    %806 = vmatpush1.msra.mxu0 0.0
    %807 = vmatprep.subr.mxu0 0.0
    %808 = vmatpush1.msra.mxu0 0.0
    %809 = vmatprep.subr.mxu0 0.0
    %810 = vmatpush1.msra.mxu0 0.0
    %811 = vmatprep.subr.mxu0 0.0
    %812 = vmatpush1.msra.mxu0 0.0
    %813 = vmatprep.subr.mxu0 0.0
    %814 = vmatpush1.msra.mxu0 0.0
    %815 = vmatprep.subr.mxu0 0.0
    %816 = vmatpush1.msra.mxu0 0.0
    %817 = vmatprep.subr.mxu0 0.0
    %818 = vmatpush1.msra.mxu0 0.0
    %819 = vmatprep.subr.mxu0 0.0
    %820 = vmatpush1.msra.mxu0 0.0
    %821 = vmatprep.subr.mxu0 0.0
    %822 = vmatpush1.msra.mxu0 0.0
    %823 = vmatprep.subr.mxu0 0.0
    %824 = vmatpush1.msra.mxu0 0.0
    %825 = vmatprep.subr.mxu0 0.0
    %826 = vmatpush1.msra.mxu0 0.0
    %827 = vmatprep.subr.mxu0 0.0
    %828 = vmatpush1.msra.mxu0 0.0
    %829 = vmatprep.subr.mxu0 0.0
    %830 = vmatpush1.msra.mxu0 0.0
    %831 = vmatprep.subr.mxu0 0.0
    %832 = vmatpush1.msra.mxu0 0.0
    %833 = vmatprep.subr.mxu0 0.0
    %834 = vmatpush1.msra.mxu0 0.0
    %835 = vmatprep.subr.mxu0 0.0
    %836 = vmatpush1.msra.mxu0 0.0
    %837 = vmatprep.subr.mxu0 0.0
    %838 = vmatpush1.msra.mxu0 0.0
    %839 = vmatprep.subr.mxu0 0.0
    %840 = vmatpush1.msra.mxu0 0.0
    %841 = vmatprep.subr.mxu0 0.0
    %842 = vmatpush1.msra.mxu0 0.0
    %843 = vmatprep.subr.mxu0 0.0
    %844 = vmatpush1.msra.mxu0 0.0
    %845 = vmatprep.subr.mxu0 0.0
    %846 = vmatpush1.msra.mxu0 0.0
    %847 = vmatprep.subr.mxu0 0.0
    %848 = vmatpush1.msra.mxu0 0.0
    %849 = vmatprep.subr.mxu0 0.0
    %850 = vmatpush1.msra.mxu0 0.0
    %851 = vmatprep.subr.mxu0 0.0
    %852 = vmatpush1.msra.mxu0 0.0
    %853 = vmatprep.subr.mxu0 0.0
    %854 = vmatpush1.msra.mxu0 0.0
    %855 = vmatprep.mubr.f32.mxu0 0.0
    %856 = vmatmul.mubr.f32.gmra.mrb[0].mxu0 %v780
    %v857 = vpop.f32.mrb[0].mxu0
    %v858 = vadd.f32 %v777, %v857
    %v859 = vpop.f32.mrb[0].mxu0
    %860 = vmatprep.mubr.f32.mxu0 0.0
    %861 = vmatmul.mubr.f32.gmra.mrb[0].mxu0 %v783
    %v862 = vpop.f32.mrb[0].mxu0
    %v863 = vadd.f32 %v777, %v862
    %v864 = vpop.f32.mrb[0].mxu0
    %865 = vmatprep.mubr.f32.mxu0 0.0
    %866 = vmatmul.mubr.f32.gmra.mrb[0].mxu0 %v786
    %v867 = vpop.f32.mrb[0].mxu0
    %v868 = vadd.f32 %v777, %v867
    %v869 = vpop.f32.mrb[0].mxu0
    %870 = vmatprep.mubr.f32.mxu0 0.0
    %871 = vmatmul.mubr.f32.gmra.mrb[0].mxu0 %v789
    %v872 = vpop.f32.mrb[0].mxu0
    %v873 = vadd.f32 %v777, %v872
    %v874 = vpop.f32.mrb[0].mxu0
    %875 = vdwg.mxu0
    %v876 = vsel %vm506, %v858, 0.0
    %v877 = vsel %vm506, %v863, 0.0
    %v878 = vadd.f32 %v876, %v877
    %v879 = vsel %vm506, %v868, 0.0
    %v880 = vadd.f32 %v878, %v879
    %v881 = vsel %vm506, %v873, 0.0
    %v882 = vadd.f32 %v880, %v881
    %v883 = vrot.slane %v882, 4
    %v884 = vadd.f32 %v882, %v883
    %v885 = vrot.slane %v884, 2
    %v886 = vadd.f32 %v884, %v885
    %v887 = vrot.slane %v886, 1
    %v888 = vadd.f32 %v886, %v887
    %v889 = vmul.f32 %v888, 0.03125
    %v890 = vmul.f32 %v858, %v858
    %v891 = vmul.f32 %v863, %v863
    %v892 = vmul.f32 %v868, %v868
    %v893 = vmul.f32 %v873, %v873
    %v894 = vsel %vm506, %v890, 0.0
    %v895 = vsel %vm506, %v891, 0.0
    %v896 = vadd.f32 %v894, %v895
    %v897 = vsel %vm506, %v892, 0.0
    %v898 = vadd.f32 %v896, %v897
    %v899 = vsel %vm506, %v893, 0.0
    %v900 = vadd.f32 %v898, %v899
    %v901 = vrot.slane %v900, 4
    %v902 = vadd.f32 %v900, %v901
    %v903 = vrot.slane %v902, 2
    %v904 = vadd.f32 %v902, %v903
    %v905 = vrot.slane %v904, 1
    %v906 = vadd.f32 %v904, %v905
    %v907 = vmul.f32 %v906, 0.03125
    %v908 = vmul.f32 %v889, %v889
    %v909 = vsub.f32 %v907, %v908
    %v910 = vld [vmem:[%s27] sm:$0x1]
    %v911 = vmax.f32 %v909, 0.0
    %v912 = vadd.f32 %v911, 1e-05
    %v913 = vrsqrt.pop %v912
    %v914 = vmul.f32 %v910, %v913
    %v916 = vlaneseq
    %v917 = vshrl.u32 %v916, 7
    %v918 = vsub.s32 0, %v917
    %v919 = vrot.slane %v914, %v918
    %v921 = vmul.f32 %v858, %v919
    %v922 = vmul.f32 %v863, %v919
    %v923 = vmul.f32 %v868, %v919
    %v924 = vmul.f32 %v873, %v919
    %v925 = vld [vmem:[%s29] sm:$0x1]
    %v926 = vmul.f32 %v889, %v914
    %v927 = vsub.f32 %v925, %v926
    %v929 = vlaneseq
    %v930 = vshrl.u32 %v929, 7
    %v931 = vsub.s32 0, %v930
    %v932 = vrot.slane %v927, %v931
    %v934 = vadd.f32 %v921, %v932
    %v935 = vadd.f32 %v922, %v932
    %v936 = vadd.f32 %v923, %v932
    %v937 = vadd.f32 %v924, %v932
    %v938 = vmax.f32 %v934, 0.0
    %v939 = vmax.f32 %v935, 0.0
    %v940 = vmax.f32 %v936, 0.0
    %v941 = vmax.f32 %v937, 0.0
    %v942 = vrot.slane %v938, 7
    %v943 = vrot.slane %v939, 7
    %v944 = vrot.slane %v940, 7
    %v945 = vrot.slane %v941, 7
    %v946 = vsel %vm165, %v944, %v945
    %v947 = vsel %vm165, %v943, %v944
    %v948 = vsel %vm165, %v942, %v943
    %v949 = vsel %vm165, %v945, %v942
    %v950 = vmul.f32 %v949, %v173
    %v951 = vmul.f32 %v948, %v178
    %v952 = vmul.f32 %v947, %v183
    %v953 = vmul.f32 %v946, %v188
    %v954 = vrot.slane %v938, 1
    %v955 = vrot.slane %v939, 1
    %v956 = vrot.slane %v940, 1
    %v957 = vrot.slane %v941, 1
    %v958 = vsel %vm198, %v956, %v957
    %v959 = vsel %vm198, %v955, %v956
    %v960 = vsel %vm198, %v954, %v955
    %v961 = vsel %vm198, %v957, %v954
    %v962 = vmul.f32 %v960, %v206
    %v963 = vmul.f32 %v959, %v211
    %v964 = vmul.f32 %v958, %v216
    %v965 = vmul.f32 %v961, %v221
    %970 = vrot.lane.b32.xlu0 %v938, 16
    %v971 = vpop.permute.xlu0 %970
    %972 = vrot.lane.b32.xlu0 %v939, 16
    %v973 = vpop.permute.xlu0 %972
    %974 = vrot.lane.b32.xlu0 %v940, 16
    %v975 = vpop.permute.xlu0 %974
    %976 = vrot.lane.b32.xlu0 %v941, 16
    %v977 = vpop.permute.xlu0 %976
    %986 = vrot.lane.b32.xlu0 %v962, 32
    %v987 = vpop.permute.xlu0 %986
    %988 = vrot.lane.b32.xlu0 %v963, 32
    %v989 = vpop.permute.xlu0 %988
    %990 = vrot.lane.b32.xlu0 %v964, 32
    %v991 = vpop.permute.xlu0 %990
    %992 = vrot.lane.b32.xlu0 %v965, 32
    %v993 = vpop.permute.xlu0 %992
    %v998 = vsel %vm506, %v950, %v971
    %v999 = vsel %vm506, %v951, %v973
    %v1000 = vsel %vm506, %v952, %v975
    %v1001 = vsel %vm506, %v953, %v977
    %vm1002 = vcmask 261120
    %v1003 = vsel %vm1002, %v998, %v987
    %v1004 = vsel %vm1002, %v999, %v989
    %v1005 = vsel %vm1002, %v1000, %v991
    %v1006 = vsel %vm1002, %v1001, %v993
    %v1007 = vld [vmem:[%s31] sm:$0xff]
    %v1008 = vld [vmem:[%s31 + $0x8] sm:$0xff]
    %v1009 = vld [vmem:[%s31 + $0x10] sm:$0xff]
    %v1010 = vld [vmem:[%s31 + $0x18] sm:$0xff]
    %v1011 = vld [vmem:[%s31 + $0x20] sm:$0xff]
    %v1012 = vld [vmem:[%s31 + $0x28] sm:$0xff]
    %v1013 = vld [vmem:[%s33] sm:$0x1]
    %v1015 = vlaneseq
    %v1016 = vshrl.u32 %v1015, 7
    %v1017 = vsub.s32 0, %v1016
    %v1018 = vrot.slane %v1013, %v1017
    %vm1020 = vcmask 392192
    %v1022 = vsel %vm1020, %v1003, 0
    %v1025 = vsel %vm1020, %v1004, 0
    %v1028 = vsel %vm1020, %v1005, 0
    %v1031 = vsel %vm1020, %v1006, 0
    %1033 = vmatprep.subr.mxu0 0.0
    %1034 = vmatpush1.msra.mxu0 %v1007
    %1035 = vmatprep.subr.mxu0 0.0
    %1036 = vmatpush1.msra.mxu0 %v1008
    %1037 = vmatprep.subr.mxu0 0.0
    %1038 = vmatpush1.msra.mxu0 %v1009
    %1039 = vmatprep.subr.mxu0 0.0
    %1040 = vmatpush1.msra.mxu0 %v1010
    %1041 = vmatprep.subr.mxu0 0.0
    %1042 = vmatpush1.msra.mxu0 %v1011
    %1043 = vmatprep.subr.mxu0 0.0
    %1044 = vmatpush1.msra.mxu0 %v1012
    %1045 = vmatprep.subr.mxu0 0.0
    %1046 = vmatpush1.msra.mxu0 0.0
    %1047 = vmatprep.subr.mxu0 0.0
    %1048 = vmatpush1.msra.mxu0 0.0
    %1049 = vmatprep.subr.mxu0 0.0
    %1050 = vmatpush1.msra.mxu0 0.0
    %1051 = vmatprep.subr.mxu0 0.0
    %1052 = vmatpush1.msra.mxu0 0.0
    %1053 = vmatprep.subr.mxu0 0.0
    %1054 = vmatpush1.msra.mxu0 0.0
    %1055 = vmatprep.subr.mxu0 0.0
    %1056 = vmatpush1.msra.mxu0 0.0
    %1057 = vmatprep.subr.mxu0 0.0
    %1058 = vmatpush1.msra.mxu0 0.0
    %1059 = vmatprep.subr.mxu0 0.0
    %1060 = vmatpush1.msra.mxu0 0.0
    %1061 = vmatprep.subr.mxu0 0.0
    %1062 = vmatpush1.msra.mxu0 0.0
    %1063 = vmatprep.subr.mxu0 0.0
    %1064 = vmatpush1.msra.mxu0 0.0
    %1065 = vmatprep.subr.mxu0 0.0
    %1066 = vmatpush1.msra.mxu0 0.0
    %1067 = vmatprep.subr.mxu0 0.0
    %1068 = vmatpush1.msra.mxu0 0.0
    %1069 = vmatprep.subr.mxu0 0.0
    %1070 = vmatpush1.msra.mxu0 0.0
    %1071 = vmatprep.subr.mxu0 0.0
    %1072 = vmatpush1.msra.mxu0 0.0
    %1073 = vmatprep.subr.mxu0 0.0
    %1074 = vmatpush1.msra.mxu0 0.0
    %1075 = vmatprep.subr.mxu0 0.0
    %1076 = vmatpush1.msra.mxu0 0.0
    %1077 = vmatprep.subr.mxu0 0.0
    %1078 = vmatpush1.msra.mxu0 0.0
    %1079 = vmatprep.subr.mxu0 0.0
    %1080 = vmatpush1.msra.mxu0 0.0
    %1081 = vmatprep.subr.mxu0 0.0
    %1082 = vmatpush1.msra.mxu0 0.0
    %1083 = vmatprep.subr.mxu0 0.0
    %1084 = vmatpush1.msra.mxu0 0.0
    %1085 = vmatprep.subr.mxu0 0.0
    %1086 = vmatpush1.msra.mxu0 0.0
    %1087 = vmatprep.subr.mxu0 0.0
    %1088 = vmatpush1.msra.mxu0 0.0
    %1089 = vmatprep.subr.mxu0 0.0
    %1090 = vmatpush1.msra.mxu0 0.0
    %1091 = vmatprep.subr.mxu0 0.0
    %1092 = vmatpush1.msra.mxu0 0.0
    %1093 = vmatprep.subr.mxu0 0.0
    %1094 = vmatpush1.msra.mxu0 0.0
    %1095 = vmatprep.subr.mxu0 0.0
    %1096 = vmatpush1.msra.mxu0 0.0
    %1097 = vmatprep.mubr.f32.mxu0 0.0
    %1098 = vmatmul.mubr.f32.gmra.mrb[0].mxu0 %v1022
    %v1099 = vpop.f32.mrb[0].mxu0
    %v1100 = vadd.f32 %v1018, %v1099
    %v1101 = vpop.f32.mrb[0].mxu0
    %1102 = vmatprep.mubr.f32.mxu0 0.0
    %1103 = vmatmul.mubr.f32.gmra.mrb[0].mxu0 %v1025
    %v1104 = vpop.f32.mrb[0].mxu0
    %v1105 = vadd.f32 %v1018, %v1104
    %v1106 = vpop.f32.mrb[0].mxu0
    %1107 = vmatprep.mubr.f32.mxu0 0.0
    %1108 = vmatmul.mubr.f32.gmra.mrb[0].mxu0 %v1028
    %v1109 = vpop.f32.mrb[0].mxu0
    %v1110 = vadd.f32 %v1018, %v1109
    %v1111 = vpop.f32.mrb[0].mxu0
    %1112 = vmatprep.mubr.f32.mxu0 0.0
    %1113 = vmatmul.mubr.f32.gmra.mrb[0].mxu0 %v1031
    %v1114 = vpop.f32.mrb[0].mxu0
    %v1115 = vadd.f32 %v1018, %v1114
    %v1116 = vpop.f32.mrb[0].mxu0
    %1117 = vdwg.mxu0
    %v1118 = vsel %vm506, %v1100, 0.0
    %v1119 = vsel %vm506, %v1105, 0.0
    %v1120 = vadd.f32 %v1118, %v1119
    %v1121 = vsel %vm506, %v1110, 0.0
    %v1122 = vadd.f32 %v1120, %v1121
    %v1123 = vsel %vm506, %v1115, 0.0
    %v1124 = vadd.f32 %v1122, %v1123
    %v1125 = vrot.slane %v1124, 4
    %v1126 = vadd.f32 %v1124, %v1125
    %v1127 = vrot.slane %v1126, 2
    %v1128 = vadd.f32 %v1126, %v1127
    %v1129 = vrot.slane %v1128, 1
    %v1130 = vadd.f32 %v1128, %v1129
    %v1131 = vmul.f32 %v1130, 0.03125
    %v1132 = vmul.f32 %v1100, %v1100
    %v1133 = vmul.f32 %v1105, %v1105
    %v1134 = vmul.f32 %v1110, %v1110
    %v1135 = vmul.f32 %v1115, %v1115
    %v1136 = vsel %vm506, %v1132, 0.0
    %v1137 = vsel %vm506, %v1133, 0.0
    %v1138 = vadd.f32 %v1136, %v1137
    %v1139 = vsel %vm506, %v1134, 0.0
    %v1140 = vadd.f32 %v1138, %v1139
    %v1141 = vsel %vm506, %v1135, 0.0
    %v1142 = vadd.f32 %v1140, %v1141
    %v1143 = vrot.slane %v1142, 4
    %v1144 = vadd.f32 %v1142, %v1143
    %v1145 = vrot.slane %v1144, 2
    %v1146 = vadd.f32 %v1144, %v1145
    %v1147 = vrot.slane %v1146, 1
    %v1148 = vadd.f32 %v1146, %v1147
    %v1149 = vmul.f32 %v1148, 0.03125
    %v1150 = vmul.f32 %v1131, %v1131
    %v1151 = vsub.f32 %v1149, %v1150
    %v1152 = vld [vmem:[%s35] sm:$0x1]
    %v1153 = vmax.f32 %v1151, 0.0
    %v1154 = vadd.f32 %v1153, 1e-05
    %v1155 = vrsqrt.pop %v1154
    %v1156 = vmul.f32 %v1152, %v1155
    %v1158 = vlaneseq
    %v1159 = vshrl.u32 %v1158, 7
    %v1160 = vsub.s32 0, %v1159
    %v1161 = vrot.slane %v1156, %v1160
    %v1163 = vmul.f32 %v1100, %v1161
    %v1164 = vmul.f32 %v1105, %v1161
    %v1165 = vmul.f32 %v1110, %v1161
    %v1166 = vmul.f32 %v1115, %v1161
    %v1167 = vld [vmem:[%s37] sm:$0x1]
    %v1168 = vmul.f32 %v1131, %v1156
    %v1169 = vsub.f32 %v1167, %v1168
    %v1171 = vlaneseq
    %v1172 = vshrl.u32 %v1171, 7
    %v1173 = vsub.s32 0, %v1172
    %v1174 = vrot.slane %v1169, %v1173
    %v1176 = vadd.f32 %v1163, %v1174
    %v1177 = vadd.f32 %v1164, %v1174
    %v1178 = vadd.f32 %v1165, %v1174
    %v1179 = vadd.f32 %v1166, %v1174
    %1184 = vrot.lane.b32.xlu0 %v858, 112
    %v1185 = vpop.permute.xlu0 %1184
    %1186 = vrot.lane.b32.xlu0 %v863, 112
    %v1187 = vpop.permute.xlu0 %1186
    %1188 = vrot.lane.b32.xlu0 %v868, 112
    %v1189 = vpop.permute.xlu0 %1188
    %1190 = vrot.lane.b32.xlu0 %v873, 112
    %v1191 = vpop.permute.xlu0 %1190
    %v1196 = vadd.f32 %v1176, %v1185
    %v1197 = vadd.f32 %v1177, %v1187
    %v1198 = vadd.f32 %v1178, %v1189
    %v1199 = vadd.f32 %v1179, %v1191
    %v1200 = vmax.f32 %v1196, 0.0
    %v1201 = vmax.f32 %v1197, 0.0
    %v1202 = vmax.f32 %v1198, 0.0
    %v1203 = vmax.f32 %v1199, 0.0
    %v1204 = vrot.slane %v1200, 7
    %v1205 = vrot.slane %v1201, 7
    %v1206 = vrot.slane %v1202, 7
    %v1207 = vrot.slane %v1203, 7
    %v1208 = vsel %vm165, %v1206, %v1207
    %v1209 = vsel %vm165, %v1205, %v1206
    %v1210 = vsel %vm165, %v1204, %v1205
    %v1211 = vsel %vm165, %v1207, %v1204
    %v1212 = vmul.f32 %v1211, %v173
    %v1213 = vmul.f32 %v1210, %v178
    %v1214 = vmul.f32 %v1209, %v183
    %v1215 = vmul.f32 %v1208, %v188
    %v1216 = vrot.slane %v1200, 1
    %v1217 = vrot.slane %v1201, 1
    %v1218 = vrot.slane %v1202, 1
    %v1219 = vrot.slane %v1203, 1
    %v1220 = vsel %vm198, %v1218, %v1219
    %v1221 = vsel %vm198, %v1217, %v1218
    %v1222 = vsel %vm198, %v1216, %v1217
    %v1223 = vsel %vm198, %v1219, %v1216
    %v1224 = vmul.f32 %v1222, %v206
    %v1225 = vmul.f32 %v1221, %v211
    %v1226 = vmul.f32 %v1220, %v216
    %v1227 = vmul.f32 %v1223, %v221
    %1232 = vrot.lane.b32.xlu0 %v1200, 16
    %v1233 = vpop.permute.xlu0 %1232
    %1234 = vrot.lane.b32.xlu0 %v1201, 16
    %v1235 = vpop.permute.xlu0 %1234
    %1236 = vrot.lane.b32.xlu0 %v1202, 16
    %v1237 = vpop.permute.xlu0 %1236
    %1238 = vrot.lane.b32.xlu0 %v1203, 16
    %v1239 = vpop.permute.xlu0 %1238
    %1248 = vrot.lane.b32.xlu0 %v1224, 32
    %v1249 = vpop.permute.xlu0 %1248
    %1250 = vrot.lane.b32.xlu0 %v1225, 32
    %v1251 = vpop.permute.xlu0 %1250
    %1252 = vrot.lane.b32.xlu0 %v1226, 32
    %v1253 = vpop.permute.xlu0 %1252
    %1254 = vrot.lane.b32.xlu0 %v1227, 32
    %v1255 = vpop.permute.xlu0 %1254
    %v1260 = vsel %vm506, %v1212, %v1233
    %v1261 = vsel %vm506, %v1213, %v1235
    %v1262 = vsel %vm506, %v1214, %v1237
    %v1263 = vsel %vm506, %v1215, %v1239
    %v1264 = vsel %vm1002, %v1260, %v1249
    %v1265 = vsel %vm1002, %v1261, %v1251
    %v1266 = vsel %vm1002, %v1262, %v1253
    %v1267 = vsel %vm1002, %v1263, %v1255
    %v1268 = vld [vmem:[%s39] sm:$0xff]
    %v1269 = vld [vmem:[%s39 + $0x8] sm:$0xff]
    %v1270 = vld [vmem:[%s39 + $0x10] sm:$0xff]
    %v1271 = vld [vmem:[%s39 + $0x18] sm:$0xff]
    %v1272 = vld [vmem:[%s39 + $0x20] sm:$0xff]
    %v1273 = vld [vmem:[%s39 + $0x28] sm:$0xff]
    %v1274 = vld [vmem:[%s41] sm:$0x1]
    %v1276 = vlaneseq
    %v1277 = vshrl.u32 %v1276, 7
    %v1278 = vsub.s32 0, %v1277
    %v1279 = vrot.slane %v1274, %v1278
    %v1282 = vsel %vm1020, %v1264, 0
    %v1285 = vsel %vm1020, %v1265, 0
    %v1288 = vsel %vm1020, %v1266, 0
    %v1291 = vsel %vm1020, %v1267, 0
    %1293 = vmatprep.subr.mxu0 0.0
    %1294 = vmatpush1.msra.mxu0 %v1268
    %1295 = vmatprep.subr.mxu0 0.0
    %1296 = vmatpush1.msra.mxu0 %v1269
    %1297 = vmatprep.subr.mxu0 0.0
    %1298 = vmatpush1.msra.mxu0 %v1270
    %1299 = vmatprep.subr.mxu0 0.0
    %1300 = vmatpush1.msra.mxu0 %v1271
    %1301 = vmatprep.subr.mxu0 0.0
    %1302 = vmatpush1.msra.mxu0 %v1272
    %1303 = vmatprep.subr.mxu0 0.0
    %1304 = vmatpush1.msra.mxu0 %v1273
    %1305 = vmatprep.subr.mxu0 0.0
    %1306 = vmatpush1.msra.mxu0 0.0
    %1307 = vmatprep.subr.mxu0 0.0
    %1308 = vmatpush1.msra.mxu0 0.0
    %1309 = vmatprep.subr.mxu0 0.0
    %1310 = vmatpush1.msra.mxu0 0.0
    %1311 = vmatprep.subr.mxu0 0.0
    %1312 = vmatpush1.msra.mxu0 0.0
    %1313 = vmatprep.subr.mxu0 0.0
    %1314 = vmatpush1.msra.mxu0 0.0
    %1315 = vmatprep.subr.mxu0 0.0
    %1316 = vmatpush1.msra.mxu0 0.0
    %1317 = vmatprep.subr.mxu0 0.0
    %1318 = vmatpush1.msra.mxu0 0.0
    %1319 = vmatprep.subr.mxu0 0.0
    %1320 = vmatpush1.msra.mxu0 0.0
    %1321 = vmatprep.subr.mxu0 0.0
    %1322 = vmatpush1.msra.mxu0 0.0
    %1323 = vmatprep.subr.mxu0 0.0
    %1324 = vmatpush1.msra.mxu0 0.0
    %1325 = vmatprep.subr.mxu0 0.0
    %1326 = vmatpush1.msra.mxu0 0.0
    %1327 = vmatprep.subr.mxu0 0.0
    %1328 = vmatpush1.msra.mxu0 0.0
    %1329 = vmatprep.subr.mxu0 0.0
    %1330 = vmatpush1.msra.mxu0 0.0
    %1331 = vmatprep.subr.mxu0 0.0
    %1332 = vmatpush1.msra.mxu0 0.0
    %1333 = vmatprep.subr.mxu0 0.0
    %1334 = vmatpush1.msra.mxu0 0.0
    %1335 = vmatprep.subr.mxu0 0.0
    %1336 = vmatpush1.msra.mxu0 0.0
    %1337 = vmatprep.subr.mxu0 0.0
    %1338 = vmatpush1.msra.mxu0 0.0
    %1339 = vmatprep.subr.mxu0 0.0
    %1340 = vmatpush1.msra.mxu0 0.0
    %1341 = vmatprep.subr.mxu0 0.0
    %1342 = vmatpush1.msra.mxu0 0.0
    %1343 = vmatprep.subr.mxu0 0.0
    %1344 = vmatpush1.msra.mxu0 0.0
    %1345 = vmatprep.subr.mxu0 0.0
    %1346 = vmatpush1.msra.mxu0 0.0
    %1347 = vmatprep.subr.mxu0 0.0
    %1348 = vmatpush1.msra.mxu0 0.0
    %1349 = vmatprep.subr.mxu0 0.0
    %1350 = vmatpush1.msra.mxu0 0.0
    %1351 = vmatprep.subr.mxu0 0.0
    %1352 = vmatpush1.msra.mxu0 0.0
    %1353 = vmatprep.subr.mxu0 0.0
    %1354 = vmatpush1.msra.mxu0 0.0
    %1355 = vmatprep.subr.mxu0 0.0
    %1356 = vmatpush1.msra.mxu0 0.0
    %1357 = vmatprep.mubr.f32.mxu0 0.0
    %1358 = vmatmul.mubr.f32.gmra.mrb[0].mxu0 %v1282
    %v1359 = vpop.f32.mrb[0].mxu0
    %v1360 = vadd.f32 %v1279, %v1359
    %v1361 = vpop.f32.mrb[0].mxu0
    %1362 = vmatprep.mubr.f32.mxu0 0.0
    %1363 = vmatmul.mubr.f32.gmra.mrb[0].mxu0 %v1285
    %v1364 = vpop.f32.mrb[0].mxu0
    %v1365 = vadd.f32 %v1279, %v1364
    %v1366 = vpop.f32.mrb[0].mxu0
    %1367 = vmatprep.mubr.f32.mxu0 0.0
    %1368 = vmatmul.mubr.f32.gmra.mrb[0].mxu0 %v1288
    %v1369 = vpop.f32.mrb[0].mxu0
    %v1370 = vadd.f32 %v1279, %v1369
    %v1371 = vpop.f32.mrb[0].mxu0
    %1372 = vmatprep.mubr.f32.mxu0 0.0
    %1373 = vmatmul.mubr.f32.gmra.mrb[0].mxu0 %v1291
    %v1374 = vpop.f32.mrb[0].mxu0
    %v1375 = vadd.f32 %v1279, %v1374
    %v1376 = vpop.f32.mrb[0].mxu0
    %1377 = vdwg.mxu0
    %v1378 = vsel %vm1002, %v1360, 0.0
    %v1379 = vsel %vm1002, %v1365, 0.0
    %v1380 = vadd.f32 %v1378, %v1379
    %v1381 = vsel %vm1002, %v1370, 0.0
    %v1382 = vadd.f32 %v1380, %v1381
    %v1383 = vsel %vm1002, %v1375, 0.0
    %v1384 = vadd.f32 %v1382, %v1383
    %v1385 = vrot.slane %v1384, 4
    %v1386 = vadd.f32 %v1384, %v1385
    %v1387 = vrot.slane %v1386, 2
    %v1388 = vadd.f32 %v1386, %v1387
    %v1389 = vrot.slane %v1388, 1
    %v1390 = vadd.f32 %v1388, %v1389
    %v1391 = vmul.f32 %v1390, 0.03125
    %v1392 = vmul.f32 %v1360, %v1360
    %v1393 = vmul.f32 %v1365, %v1365
    %v1394 = vmul.f32 %v1370, %v1370
    %v1395 = vmul.f32 %v1375, %v1375
    %v1396 = vsel %vm1002, %v1392, 0.0
    %v1397 = vsel %vm1002, %v1393, 0.0
    %v1398 = vadd.f32 %v1396, %v1397
    %v1399 = vsel %vm1002, %v1394, 0.0
    %v1400 = vadd.f32 %v1398, %v1399
    %v1401 = vsel %vm1002, %v1395, 0.0
    %v1402 = vadd.f32 %v1400, %v1401
    %v1403 = vrot.slane %v1402, 4
    %v1404 = vadd.f32 %v1402, %v1403
    %v1405 = vrot.slane %v1404, 2
    %v1406 = vadd.f32 %v1404, %v1405
    %v1407 = vrot.slane %v1406, 1
    %v1408 = vadd.f32 %v1406, %v1407
    %v1409 = vmul.f32 %v1408, 0.03125
    %v1410 = vmul.f32 %v1391, %v1391
    %v1411 = vsub.f32 %v1409, %v1410
    %v1412 = vld [vmem:[%s43] sm:$0x1]
    %v1413 = vmax.f32 %v1411, 0.0
    %v1414 = vadd.f32 %v1413, 1e-05
    %v1415 = vrsqrt.pop %v1414
    %v1416 = vmul.f32 %v1412, %v1415
    %v1418 = vlaneseq
    %v1419 = vshrl.u32 %v1418, 7
    %v1420 = vsub.s32 0, %v1419
    %v1421 = vrot.slane %v1416, %v1420
    %v1423 = vmul.f32 %v1360, %v1421
    %v1424 = vmul.f32 %v1365, %v1421
    %v1425 = vmul.f32 %v1370, %v1421
    %v1426 = vmul.f32 %v1375, %v1421
    %v1427 = vld [vmem:[%s45] sm:$0x1]
    %v1428 = vmul.f32 %v1391, %v1416
    %v1429 = vsub.f32 %v1427, %v1428
    %v1431 = vlaneseq
    %v1432 = vshrl.u32 %v1431, 7
    %v1433 = vsub.s32 0, %v1432
    %v1434 = vrot.slane %v1429, %v1433
    %v1436 = vadd.f32 %v1423, %v1434
    %v1437 = vadd.f32 %v1424, %v1434
    %v1438 = vadd.f32 %v1425, %v1434
    %v1439 = vadd.f32 %v1426, %v1434
    %v1440 = vmax.f32 %v1436, 0.0
    %v1441 = vmax.f32 %v1437, 0.0
    %v1442 = vmax.f32 %v1438, 0.0
    %v1443 = vmax.f32 %v1439, 0.0
    %v1444 = vrot.slane %v1440, 7
    %v1445 = vrot.slane %v1441, 7
    %v1446 = vrot.slane %v1442, 7
    %v1447 = vrot.slane %v1443, 7
    %v1448 = vsel %vm165, %v1446, %v1447
    %v1449 = vsel %vm165, %v1445, %v1446
    %v1450 = vsel %vm165, %v1444, %v1445
    %v1451 = vsel %vm165, %v1447, %v1444
    %v1452 = vmul.f32 %v1451, %v173
    %v1453 = vmul.f32 %v1450, %v178
    %v1454 = vmul.f32 %v1449, %v183
    %v1455 = vmul.f32 %v1448, %v188
    %v1456 = vrot.slane %v1440, 1
    %v1457 = vrot.slane %v1441, 1
    %v1458 = vrot.slane %v1442, 1
    %v1459 = vrot.slane %v1443, 1
    %v1460 = vsel %vm198, %v1458, %v1459
    %v1461 = vsel %vm198, %v1457, %v1458
    %v1462 = vsel %vm198, %v1456, %v1457
    %v1463 = vsel %vm198, %v1459, %v1456
    %v1464 = vmul.f32 %v1462, %v206
    %v1465 = vmul.f32 %v1461, %v211
    %v1466 = vmul.f32 %v1460, %v216
    %v1467 = vmul.f32 %v1463, %v221
    %1472 = vrot.lane.b32.xlu0 %v1440, 32
    %v1473 = vpop.permute.xlu0 %1472
    %1474 = vrot.lane.b32.xlu0 %v1441, 32
    %v1475 = vpop.permute.xlu0 %1474
    %1476 = vrot.lane.b32.xlu0 %v1442, 32
    %v1477 = vpop.permute.xlu0 %1476
    %1478 = vrot.lane.b32.xlu0 %v1443, 32
    %v1479 = vpop.permute.xlu0 %1478
    %1488 = vrot.lane.b32.xlu0 %v1464, 64
    %v1489 = vpop.permute.xlu0 %1488
    %1490 = vrot.lane.b32.xlu0 %v1465, 64
    %v1491 = vpop.permute.xlu0 %1490
    %1492 = vrot.lane.b32.xlu0 %v1466, 64
    %v1493 = vpop.permute.xlu0 %1492
    %1494 = vrot.lane.b32.xlu0 %v1467, 64
    %v1495 = vpop.permute.xlu0 %1494
    %v1500 = vsel %vm1002, %v1452, %v1473
    %v1501 = vsel %vm1002, %v1453, %v1475
    %v1502 = vsel %vm1002, %v1454, %v1477
    %v1503 = vsel %vm1002, %v1455, %v1479
    %vm1504 = vcmask 523264
    %v1505 = vsel %vm1504, %v1500, %v1489
    %v1506 = vsel %vm1504, %v1501, %v1491
    %v1507 = vsel %vm1504, %v1502, %v1493
    %v1508 = vsel %vm1504, %v1503, %v1495
    %v1509 = vld [vmem:[%s47] sm:$0xff]
    %v1510 = vld [vmem:[%s47 + $0x8] sm:$0xff]
    %v1511 = vld [vmem:[%s47 + $0x10] sm:$0xff]
    %v1512 = vld [vmem:[%s47 + $0x18] sm:$0xff]
    %v1513 = vld [vmem:[%s47 + $0x20] sm:$0xff]
    %v1514 = vld [vmem:[%s47 + $0x28] sm:$0xff]
    %v1515 = vld [vmem:[%s47 + $0x30] sm:$0xff]
    %v1516 = vld [vmem:[%s47 + $0x38] sm:$0xff]
    %v1517 = vld [vmem:[%s47 + $0x40] sm:$0xff]
    %v1518 = vld [vmem:[%s47 + $0x48] sm:$0xff]
    %v1519 = vld [vmem:[%s47 + $0x50] sm:$0xff]
    %v1520 = vld [vmem:[%s47 + $0x58] sm:$0xff]
    %v1521 = vld [vmem:[%s49] sm:$0x1]
    %v1523 = vlaneseq
    %v1524 = vshrl.u32 %v1523, 7
    %v1525 = vsub.s32 0, %v1524
    %v1526 = vrot.slane %v1521, %v1525
    %vm1528 = vcmask 785408
    %v1530 = vsel %vm1528, %v1505, 0
    %v1533 = vsel %vm1528, %v1506, 0
    %v1536 = vsel %vm1528, %v1507, 0
    %v1539 = vsel %vm1528, %v1508, 0
    %1541 = vmatprep.subr.mxu0 0.0
    %1542 = vmatpush1.msra.mxu0 %v1509
    %1543 = vmatprep.subr.mxu0 0.0
    %1544 = vmatpush1.msra.mxu0 %v1510
    %1545 = vmatprep.subr.mxu0 0.0
    %1546 = vmatpush1.msra.mxu0 %v1511
    %1547 = vmatprep.subr.mxu0 0.0
    %1548 = vmatpush1.msra.mxu0 %v1512
    %1549 = vmatprep.subr.mxu0 0.0
    %1550 = vmatpush1.msra.mxu0 %v1513
    %1551 = vmatprep.subr.mxu0 0.0
    %1552 = vmatpush1.msra.mxu0 %v1514
    %1553 = vmatprep.subr.mxu0 0.0
    %1554 = vmatpush1.msra.mxu0 %v1515
    %1555 = vmatprep.subr.mxu0 0.0
    %1556 = vmatpush1.msra.mxu0 %v1516
    %1557 = vmatprep.subr.mxu0 0.0
    %1558 = vmatpush1.msra.mxu0 %v1517
    %1559 = vmatprep.subr.mxu0 0.0
    %1560 = vmatpush1.msra.mxu0 %v1518
    %1561 = vmatprep.subr.mxu0 0.0
    %1562 = vmatpush1.msra.mxu0 %v1519
    %1563 = vmatprep.subr.mxu0 0.0
    %1564 = vmatpush1.msra.mxu0 %v1520
    %1565 = vmatprep.subr.mxu0 0.0
    %1566 = vmatpush1.msra.mxu0 0.0
    %1567 = vmatprep.subr.mxu0 0.0
    %1568 = vmatpush1.msra.mxu0 0.0
    %1569 = vmatprep.subr.mxu0 0.0
    %1570 = vmatpush1.msra.mxu0 0.0
    %1571 = vmatprep.subr.mxu0 0.0
    %1572 = vmatpush1.msra.mxu0 0.0
    %1573 = vmatprep.subr.mxu0 0.0
    %1574 = vmatpush1.msra.mxu0 0.0
    %1575 = vmatprep.subr.mxu0 0.0
    %1576 = vmatpush1.msra.mxu0 0.0
    %1577 = vmatprep.subr.mxu0 0.0
    %1578 = vmatpush1.msra.mxu0 0.0
    %1579 = vmatprep.subr.mxu0 0.0
    %1580 = vmatpush1.msra.mxu0 0.0
    %1581 = vmatprep.subr.mxu0 0.0
    %1582 = vmatpush1.msra.mxu0 0.0
    %1583 = vmatprep.subr.mxu0 0.0
    %1584 = vmatpush1.msra.mxu0 0.0
    %1585 = vmatprep.subr.mxu0 0.0
    %1586 = vmatpush1.msra.mxu0 0.0
    %1587 = vmatprep.subr.mxu0 0.0
    %1588 = vmatpush1.msra.mxu0 0.0
    %1589 = vmatprep.subr.mxu0 0.0
    %1590 = vmatpush1.msra.mxu0 0.0
    %1591 = vmatprep.subr.mxu0 0.0
    %1592 = vmatpush1.msra.mxu0 0.0
    %1593 = vmatprep.subr.mxu0 0.0
    %1594 = vmatpush1.msra.mxu0 0.0
    %1595 = vmatprep.subr.mxu0 0.0
    %1596 = vmatpush1.msra.mxu0 0.0
    %1597 = vmatprep.subr.mxu0 0.0
    %1598 = vmatpush1.msra.mxu0 0.0
    %1599 = vmatprep.subr.mxu0 0.0
    %1600 = vmatpush1.msra.mxu0 0.0
    %1601 = vmatprep.subr.mxu0 0.0
    %1602 = vmatpush1.msra.mxu0 0.0
    %1603 = vmatprep.subr.mxu0 0.0
    %1604 = vmatpush1.msra.mxu0 0.0
    %1605 = vmatprep.mubr.f32.mxu0 0.0
    %1606 = vmatmul.mubr.f32.gmra.mrb[0].mxu0 %v1530
    %v1607 = vpop.f32.mrb[0].mxu0
    %v1608 = vadd.f32 %v1526, %v1607
    %v1609 = vpop.f32.mrb[0].mxu0
    %1610 = vmatprep.mubr.f32.mxu0 0.0
    %1611 = vmatmul.mubr.f32.gmra.mrb[0].mxu0 %v1533
    %v1612 = vpop.f32.mrb[0].mxu0
    %v1613 = vadd.f32 %v1526, %v1612
    %v1614 = vpop.f32.mrb[0].mxu0
    %1615 = vmatprep.mubr.f32.mxu0 0.0
    %1616 = vmatmul.mubr.f32.gmra.mrb[0].mxu0 %v1536
    %v1617 = vpop.f32.mrb[0].mxu0
    %v1618 = vadd.f32 %v1526, %v1617
    %v1619 = vpop.f32.mrb[0].mxu0
    %1620 = vmatprep.mubr.f32.mxu0 0.0
    %1621 = vmatmul.mubr.f32.gmra.mrb[0].mxu0 %v1539
    %v1622 = vpop.f32.mrb[0].mxu0
    %v1623 = vadd.f32 %v1526, %v1622
    %v1624 = vpop.f32.mrb[0].mxu0
    %1625 = vdwg.mxu0
    %v1626 = vsel %vm1002, %v1608, 0.0
    %v1627 = vsel %vm1002, %v1613, 0.0
    %v1628 = vadd.f32 %v1626, %v1627
    %v1629 = vsel %vm1002, %v1618, 0.0
    %v1630 = vadd.f32 %v1628, %v1629
    %v1631 = vsel %vm1002, %v1623, 0.0
    %v1632 = vadd.f32 %v1630, %v1631
    %v1633 = vrot.slane %v1632, 4
    %v1634 = vadd.f32 %v1632, %v1633
    %v1635 = vrot.slane %v1634, 2
    %v1636 = vadd.f32 %v1634, %v1635
    %v1637 = vrot.slane %v1636, 1
    %v1638 = vadd.f32 %v1636, %v1637
    %v1639 = vmul.f32 %v1638, 0.03125
    %v1640 = vmul.f32 %v1608, %v1608
    %v1641 = vmul.f32 %v1613, %v1613
    %v1642 = vmul.f32 %v1618, %v1618
    %v1643 = vmul.f32 %v1623, %v1623
    %v1644 = vsel %vm1002, %v1640, 0.0
    %v1645 = vsel %vm1002, %v1641, 0.0
    %v1646 = vadd.f32 %v1644, %v1645
    %v1647 = vsel %vm1002, %v1642, 0.0
    %v1648 = vadd.f32 %v1646, %v1647
    %v1649 = vsel %vm1002, %v1643, 0.0
    %v1650 = vadd.f32 %v1648, %v1649
    %v1651 = vrot.slane %v1650, 4
    %v1652 = vadd.f32 %v1650, %v1651
    %v1653 = vrot.slane %v1652, 2
    %v1654 = vadd.f32 %v1652, %v1653
    %v1655 = vrot.slane %v1654, 1
    %v1656 = vadd.f32 %v1654, %v1655
    %v1657 = vmul.f32 %v1656, 0.03125
    %v1658 = vmul.f32 %v1639, %v1639
    %v1659 = vsub.f32 %v1657, %v1658
    %v1660 = vld [vmem:[%s51] sm:$0x1]
    %v1661 = vmax.f32 %v1659, 0.0
    %v1662 = vadd.f32 %v1661, 1e-05
    %v1663 = vrsqrt.pop %v1662
    %v1664 = vmul.f32 %v1660, %v1663
    %v1666 = vlaneseq
    %v1667 = vshrl.u32 %v1666, 7
    %v1668 = vsub.s32 0, %v1667
    %v1669 = vrot.slane %v1664, %v1668
    %v1671 = vmul.f32 %v1608, %v1669
    %v1672 = vmul.f32 %v1613, %v1669
    %v1673 = vmul.f32 %v1618, %v1669
    %v1674 = vmul.f32 %v1623, %v1669
    %v1675 = vld [vmem:[%s53] sm:$0x1]
    %v1676 = vmul.f32 %v1639, %v1664
    %v1677 = vsub.f32 %v1675, %v1676
    %v1679 = vlaneseq
    %v1680 = vshrl.u32 %v1679, 7
    %v1681 = vsub.s32 0, %v1680
    %v1682 = vrot.slane %v1677, %v1681
    %v1684 = vadd.f32 %v1671, %v1682
    %v1685 = vadd.f32 %v1672, %v1682
    %v1686 = vadd.f32 %v1673, %v1682
    %v1687 = vadd.f32 %v1674, %v1682
    %1692 = vrot.lane.b32.xlu0 %v1360, 96
    %v1693 = vpop.permute.xlu0 %1692
    %1694 = vrot.lane.b32.xlu0 %v1365, 96
    %v1695 = vpop.permute.xlu0 %1694
    %1696 = vrot.lane.b32.xlu0 %v1370, 96
    %v1697 = vpop.permute.xlu0 %1696
    %1698 = vrot.lane.b32.xlu0 %v1375, 96
    %v1699 = vpop.permute.xlu0 %1698
    %v1704 = vadd.f32 %v1684, %v1693
    %v1705 = vadd.f32 %v1685, %v1695
    %v1706 = vadd.f32 %v1686, %v1697
    %v1707 = vadd.f32 %v1687, %v1699
    %v1708 = vmax.f32 %v1704, 0.0
    %v1709 = vmax.f32 %v1705, 0.0
    %v1710 = vmax.f32 %v1706, 0.0
    %v1711 = vmax.f32 %v1707, 0.0
    %1712 = vxpose.xlu0.b32.start [1/16] %v1708, 128
    %1713 = vxpose.xlu0.b32.cont [2/16] %v1709, 128
    %1714 = vxpose.xlu0.b32.cont [3/16] 0.0, 128
    %1715 = vxpose.xlu0.b32.cont [4/16] 0.0, 128
    %1716 = vxpose.xlu0.b32.cont [5/16] 0.0, 128
    %1717 = vxpose.xlu0.b32.cont [6/16] 0.0, 128
    %1718 = vxpose.xlu0.b32.cont [7/16] 0.0, 128
    %1719 = vxpose.xlu0.b32.cont [8/16] 0.0, 128
    %1720 = vxpose.xlu0.b32.cont [9/16] 0.0, 128
    %1721 = vxpose.xlu0.b32.cont [10/16] 0.0, 128
    %1722 = vxpose.xlu0.b32.cont [11/16] 0.0, 128
    %1723 = vxpose.xlu0.b32.cont [12/16] 0.0, 128
    %1724 = vxpose.xlu0.b32.cont [13/16] 0.0, 128
    %1725 = vxpose.xlu0.b32.cont [14/16] 0.0, 128
    %1726 = vxpose.xlu0.b32.cont [15/16] 0.0, 128
    %1727 = vxpose.xlu0.b32.end [16/16] 0.0, 128
    %v1728 = vpop.trf.xlu0
    %v1729 = vpop.trf.xlu0
    %v1730 = vpop.trf.xlu0
    %v1731 = vpop.trf.xlu0
    %v1732 = vpop.trf.xlu0
    %v1733 = vpop.trf.xlu0
    %v1734 = vpop.trf.xlu0
    %v1735 = vpop.trf.xlu0
    %v1736 = vpop.trf.xlu0
    %v1737 = vpop.trf.xlu0
    %v1738 = vpop.trf.xlu0
    %v1739 = vpop.trf.xlu0
    %v1740 = vpop.trf.xlu0
    %v1741 = vpop.trf.xlu0
    %v1742 = vpop.trf.xlu0
    %v1743 = vpop.trf.xlu0
    %1744 = vxpose.xlu0.b32.start [1/16] %v1710, 128
    %1745 = vxpose.xlu0.b32.cont [2/16] %v1711, 128
    %1746 = vxpose.xlu0.b32.cont [3/16] 0.0, 128
    %1747 = vxpose.xlu0.b32.cont [4/16] 0.0, 128
    %1748 = vxpose.xlu0.b32.cont [5/16] 0.0, 128
    %1749 = vxpose.xlu0.b32.cont [6/16] 0.0, 128
    %1750 = vxpose.xlu0.b32.cont [7/16] 0.0, 128
    %1751 = vxpose.xlu0.b32.cont [8/16] 0.0, 128
    %1752 = vxpose.xlu0.b32.cont [9/16] 0.0, 128
    %1753 = vxpose.xlu0.b32.cont [10/16] 0.0, 128
    %1754 = vxpose.xlu0.b32.cont [11/16] 0.0, 128
    %1755 = vxpose.xlu0.b32.cont [12/16] 0.0, 128
    %1756 = vxpose.xlu0.b32.cont [13/16] 0.0, 128
    %1757 = vxpose.xlu0.b32.cont [14/16] 0.0, 128
    %1758 = vxpose.xlu0.b32.cont [15/16] 0.0, 128
    %1759 = vxpose.xlu0.b32.end [16/16] 0.0, 128
    %v1760 = vpop.trf.xlu0
    %v1761 = vpop.trf.xlu0
    %v1762 = vpop.trf.xlu0
    %v1763 = vpop.trf.xlu0
    %v1764 = vpop.trf.xlu0
    %v1765 = vpop.trf.xlu0
    %v1766 = vpop.trf.xlu0
    %v1767 = vpop.trf.xlu0
    %v1768 = vpop.trf.xlu0
    %v1769 = vpop.trf.xlu0
    %v1770 = vpop.trf.xlu0
    %v1771 = vpop.trf.xlu0
    %v1772 = vpop.trf.xlu0
    %v1773 = vpop.trf.xlu0
    %v1774 = vpop.trf.xlu0
    %v1775 = vpop.trf.xlu0
    %v1776 = vld [vmem:[%s55] sm:$0xff]
    %v1777 = vld [vmem:[%s55 + $0x8] sm:$0xff]
    %v1778 = vld [vmem:[%s57] sm:$0x1]
    %v1780 = vlaneseq
    %v1781 = vshrl.u32 %v1780, 7
    %v1782 = vsub.s32 0, %v1781
    %v1783 = vrot.slane %v1778, %v1782
    %v1786 = vsel %vm506, %v1728, 0
    %v1789 = vsel %vm506, %v1729, 0
    %v1792 = vsel %vm506, %v1730, 0
    %v1795 = vsel %vm506, %v1731, 0
    %v1798 = vsel %vm506, %v1760, 0
    %v1801 = vsel %vm506, %v1761, 0
    %v1804 = vsel %vm506, %v1762, 0
    %v1807 = vsel %vm506, %v1763, 0
    %1809 = vmatprep.subr.mxu0 0.0
    %1810 = vmatpush1.msra.mxu0 %v1776
    %1811 = vmatprep.subr.mxu0 0.0
    %1812 = vmatpush1.msra.mxu0 %v1777
    %1813 = vmatprep.subr.mxu0 0.0
    %1814 = vmatpush1.msra.mxu0 0.0
    %1815 = vmatprep.subr.mxu0 0.0
    %1816 = vmatpush1.msra.mxu0 0.0
    %1817 = vmatprep.subr.mxu0 0.0
    %1818 = vmatpush1.msra.mxu0 0.0
    %1819 = vmatprep.subr.mxu0 0.0
    %1820 = vmatpush1.msra.mxu0 0.0
    %1821 = vmatprep.subr.mxu0 0.0
    %1822 = vmatpush1.msra.mxu0 0.0
    %1823 = vmatprep.subr.mxu0 0.0
    %1824 = vmatpush1.msra.mxu0 0.0
    %1825 = vmatprep.subr.mxu0 0.0
    %1826 = vmatpush1.msra.mxu0 0.0
    %1827 = vmatprep.subr.mxu0 0.0
    %1828 = vmatpush1.msra.mxu0 0.0
    %1829 = vmatprep.subr.mxu0 0.0
    %1830 = vmatpush1.msra.mxu0 0.0
    %1831 = vmatprep.subr.mxu0 0.0
    %1832 = vmatpush1.msra.mxu0 0.0
    %1833 = vmatprep.subr.mxu0 0.0
    %1834 = vmatpush1.msra.mxu0 0.0
    %1835 = vmatprep.subr.mxu0 0.0
    %1836 = vmatpush1.msra.mxu0 0.0
    %1837 = vmatprep.subr.mxu0 0.0
    %1838 = vmatpush1.msra.mxu0 0.0
    %1839 = vmatprep.subr.mxu0 0.0
    %1840 = vmatpush1.msra.mxu0 0.0
    %1841 = vmatprep.subr.mxu0 0.0
    %1842 = vmatpush1.msra.mxu0 0.0
    %1843 = vmatprep.subr.mxu0 0.0
    %1844 = vmatpush1.msra.mxu0 0.0
    %1845 = vmatprep.subr.mxu0 0.0
    %1846 = vmatpush1.msra.mxu0 0.0
    %1847 = vmatprep.subr.mxu0 0.0
    %1848 = vmatpush1.msra.mxu0 0.0
    %1849 = vmatprep.subr.mxu0 0.0
    %1850 = vmatpush1.msra.mxu0 0.0
    %1851 = vmatprep.subr.mxu0 0.0
    %1852 = vmatpush1.msra.mxu0 0.0
    %1853 = vmatprep.subr.mxu0 0.0
    %1854 = vmatpush1.msra.mxu0 0.0
    %1855 = vmatprep.subr.mxu0 0.0
    %1856 = vmatpush1.msra.mxu0 0.0
    %1857 = vmatprep.subr.mxu0 0.0
    %1858 = vmatpush1.msra.mxu0 0.0
    %1859 = vmatprep.subr.mxu0 0.0
    %1860 = vmatpush1.msra.mxu0 0.0
    %1861 = vmatprep.subr.mxu0 0.0
    %1862 = vmatpush1.msra.mxu0 0.0
    %1863 = vmatprep.subr.mxu0 0.0
    %1864 = vmatpush1.msra.mxu0 0.0
    %1865 = vmatprep.subr.mxu0 0.0
    %1866 = vmatpush1.msra.mxu0 0.0
    %1867 = vmatprep.subr.mxu0 0.0
    %1868 = vmatpush1.msra.mxu0 0.0
    %1869 = vmatprep.subr.mxu0 0.0
    %1870 = vmatpush1.msra.mxu0 0.0
    %1871 = vmatprep.subr.mxu0 0.0
    %1872 = vmatpush1.msra.mxu0 0.0
    %1873 = vmatprep.mubr.f32.mxu0 0.0
    %1874 = vmatmul.mubr.f32.gmra.mrb[0].mxu0 %v1786
    %v1875 = vpop.f32.mrb[0].mxu0
    %v1876 = vadd.f32 %v1783, %v1875
    %v1877 = vpop.f32.mrb[0].mxu0
    %1878 = vmatprep.mubr.f32.mxu0 0.0
    %1879 = vmatmul.mubr.f32.gmra.mrb[0].mxu0 %v1789
    %v1880 = vpop.f32.mrb[0].mxu0
    %v1881 = vadd.f32 %v1783, %v1880
    %v1882 = vpop.f32.mrb[0].mxu0
    %1883 = vmatprep.mubr.f32.mxu0 0.0
    %1884 = vmatmul.mubr.f32.gmra.mrb[0].mxu0 %v1792
    %v1885 = vpop.f32.mrb[0].mxu0
    %v1886 = vadd.f32 %v1783, %v1885
    %v1887 = vpop.f32.mrb[0].mxu0
    %1888 = vmatprep.mubr.f32.mxu0 0.0
    %1889 = vmatmul.mubr.f32.gmra.mrb[0].mxu0 %v1795
    %v1890 = vpop.f32.mrb[0].mxu0
    %v1891 = vadd.f32 %v1783, %v1890
    %v1892 = vpop.f32.mrb[0].mxu0
    %1893 = vmatprep.mubr.f32.mxu0 0.0
    %1894 = vmatmul.mubr.f32.gmra.mrb[0].mxu0 %v1798
    %v1895 = vpop.f32.mrb[0].mxu0
    %v1896 = vadd.f32 %v1783, %v1895
    %v1897 = vpop.f32.mrb[0].mxu0
    %1898 = vmatprep.mubr.f32.mxu0 0.0
    %1899 = vmatmul.mubr.f32.gmra.mrb[0].mxu0 %v1801
    %v1900 = vpop.f32.mrb[0].mxu0
    %v1901 = vadd.f32 %v1783, %v1900
    %v1902 = vpop.f32.mrb[0].mxu0
    %1903 = vmatprep.mubr.f32.mxu0 0.0
    %1904 = vmatmul.mubr.f32.gmra.mrb[0].mxu0 %v1804
    %v1905 = vpop.f32.mrb[0].mxu0
    %v1906 = vadd.f32 %v1783, %v1905
    %v1907 = vpop.f32.mrb[0].mxu0
    %1908 = vmatprep.mubr.f32.mxu0 0.0
    %1909 = vmatmul.mubr.f32.gmra.mrb[0].mxu0 %v1807
    %v1910 = vpop.f32.mrb[0].mxu0
    %v1911 = vadd.f32 %v1783, %v1910
    %v1912 = vpop.f32.mrb[0].mxu0
    %1913 = vdwg.mxu0
    %v1914 = vsel %vm506, %v1876, -inf
    %1915 = vmax.xlane.f32.xlu0 %v1914
    %v1916 = vpop.xlane.xlu0 %1915
    %v1917 = vsel %vm506, %v1881, -inf
    %1918 = vmax.xlane.f32.xlu0 %v1917
    %v1919 = vpop.xlane.xlu0 %1918
    %v1920 = vsel %vm506, %v1886, -inf
    %1921 = vmax.xlane.f32.xlu0 %v1920
    %v1922 = vpop.xlane.xlu0 %1921
    %v1923 = vsel %vm506, %v1891, -inf
    %1924 = vmax.xlane.f32.xlu0 %v1923
    %v1925 = vpop.xlane.xlu0 %1924
    %v1926 = vsel %vm506, %v1896, -inf
    %1927 = vmax.xlane.f32.xlu0 %v1926
    %v1928 = vpop.xlane.xlu0 %1927
    %v1929 = vsel %vm506, %v1901, -inf
    %1930 = vmax.xlane.f32.xlu0 %v1929
    %v1931 = vpop.xlane.xlu0 %1930
    %v1932 = vsel %vm506, %v1906, -inf
    %1933 = vmax.xlane.f32.xlu0 %v1932
    %v1934 = vpop.xlane.xlu0 %1933
    %v1935 = vsel %vm506, %v1911, -inf
    %1936 = vmax.xlane.f32.xlu0 %v1935
    %v1937 = vpop.xlane.xlu0 %1936
    %v1938 = vsub.f32 %v1876, %v1916
    %v1939 = vsub.f32 %v1881, %v1919
    %v1940 = vsub.f32 %v1886, %v1922
    %v1941 = vsub.f32 %v1891, %v1925
    %v1942 = vsub.f32 %v1896, %v1928
    %v1943 = vsub.f32 %v1901, %v1931
    %v1944 = vsub.f32 %v1906, %v1934
    %v1945 = vsub.f32 %v1911, %v1937
    %v1946 = vmul.f32 %v1938, 1.442695
    %v1947 = vpow.pop %v1946
    %v1948 = vmul.f32 %v1939, 1.442695
    %v1949 = vpow.pop %v1948
    %v1950 = vmul.f32 %v1940, 1.442695
    %v1951 = vpow.pop %v1950
    %v1952 = vmul.f32 %v1941, 1.442695
    %v1953 = vpow.pop %v1952
    %v1954 = vmul.f32 %v1942, 1.442695
    %v1955 = vpow.pop %v1954
    %v1956 = vmul.f32 %v1943, 1.442695
    %v1957 = vpow.pop %v1956
    %v1958 = vmul.f32 %v1944, 1.442695
    %v1959 = vpow.pop %v1958
    %v1960 = vmul.f32 %v1945, 1.442695
    %v1961 = vpow.pop %v1960
    %v1962 = vsel %vm506, %v1947, 0.0
    %1963 = vadd.xlane.f32.xlu0 %v1962
    %v1964 = vpop.xlane.xlu0 %1963
    %v1965 = vsel %vm506, %v1949, 0.0
    %1966 = vadd.xlane.f32.xlu0 %v1965
    %v1967 = vpop.xlane.xlu0 %1966
    %v1968 = vsel %vm506, %v1951, 0.0
    %1969 = vadd.xlane.f32.xlu0 %v1968
    %v1970 = vpop.xlane.xlu0 %1969
    %v1971 = vsel %vm506, %v1953, 0.0
    %1972 = vadd.xlane.f32.xlu0 %v1971
    %v1973 = vpop.xlane.xlu0 %1972
    %v1974 = vsel %vm506, %v1955, 0.0
    %1975 = vadd.xlane.f32.xlu0 %v1974
    %v1976 = vpop.xlane.xlu0 %1975
    %v1977 = vsel %vm506, %v1957, 0.0
    %1978 = vadd.xlane.f32.xlu0 %v1977
    %v1979 = vpop.xlane.xlu0 %1978
    %v1980 = vsel %vm506, %v1959, 0.0
    %1981 = vadd.xlane.f32.xlu0 %v1980
    %v1982 = vpop.xlane.xlu0 %1981
    %v1983 = vsel %vm506, %v1961, 0.0
    %1984 = vadd.xlane.f32.xlu0 %v1983
    %v1985 = vpop.xlane.xlu0 %1984
    %v1986 = vrcp.pop %v1964
    %v1987 = vrcp.pop %v1967
    %v1988 = vrcp.pop %v1970
    %v1989 = vrcp.pop %v1973
    %v1990 = vrcp.pop %v1976
    %v1991 = vrcp.pop %v1979
    %v1992 = vrcp.pop %v1982
    %v1993 = vrcp.pop %v1985
    %v1994 = vmul.f32 %v1947, %v1986
    %v1995 = vmul.f32 %v1949, %v1987
    %v1996 = vmul.f32 %v1951, %v1988
    %v1997 = vmul.f32 %v1953, %v1989
    %v1998 = vmul.f32 %v1955, %v1990
    %v1999 = vmul.f32 %v1957, %v1991
    %v2000 = vmul.f32 %v1959, %v1992
    %v2001 = vmul.f32 %v1961, %v1993
    %v2002 = vmul.f32 %v1728, %v1994
    %v2003 = vmul.f32 %v1729, %v1995
    %v2004 = vmul.f32 %v1730, %v1996
    %v2005 = vmul.f32 %v1731, %v1997
    %v2006 = vmul.f32 %v1760, %v1998
    %v2007 = vmul.f32 %v1761, %v1999
    %v2008 = vmul.f32 %v1762, %v2000
    %v2009 = vmul.f32 %v1763, %v2001
    %v2010 = vsel %vm506, %v2002, 0.0
    %2011 = vadd.xlane.f32.xlu0 %v2010
    %v2012 = vpop.xlane.xlu0 %2011
    %v2013 = vsel %vm506, %v2003, 0.0
    %2014 = vadd.xlane.f32.xlu0 %v2013
    %v2015 = vpop.xlane.xlu0 %2014
    %v2016 = vsel %vm506, %v2004, 0.0
    %2017 = vadd.xlane.f32.xlu0 %v2016
    %v2018 = vpop.xlane.xlu0 %2017
    %v2019 = vsel %vm506, %v2005, 0.0
    %2020 = vadd.xlane.f32.xlu0 %v2019
    %v2021 = vpop.xlane.xlu0 %2020
    %v2022 = vsel %vm506, %v2006, 0.0
    %2023 = vadd.xlane.f32.xlu0 %v2022
    %v2024 = vpop.xlane.xlu0 %2023
    %v2025 = vsel %vm506, %v2007, 0.0
    %2026 = vadd.xlane.f32.xlu0 %v2025
    %v2027 = vpop.xlane.xlu0 %2026
    %v2028 = vsel %vm506, %v2008, 0.0
    %2029 = vadd.xlane.f32.xlu0 %v2028
    %v2030 = vpop.xlane.xlu0 %2029
    %v2031 = vsel %vm506, %v2009, 0.0
    %2032 = vadd.xlane.f32.xlu0 %v2031
    %v2033 = vpop.xlane.xlu0 %2032
    %v2034 = vmul.f32 %v2012, 0.0625
    %v2035 = vmul.f32 %v2015, 0.0625
    %v2036 = vmul.f32 %v2018, 0.0625
    %v2037 = vmul.f32 %v2021, 0.0625
    %v2038 = vmul.f32 %v2024, 0.0625
    %v2039 = vmul.f32 %v2027, 0.0625
    %v2040 = vmul.f32 %v2030, 0.0625
    %v2041 = vmul.f32 %v2033, 0.0625
    %v2042 = vld [vmem:[%s59] sm:$0xff]
    %v2043 = vld [vmem:[%s59 + $0x8] sm:$0xff]
    %v2044 = vld [vmem:[%s59 + $0x10] sm:$0xff]
    %v2045 = vld [vmem:[%s59 + $0x18] sm:$0xff]
    %v2046 = vld [vmem:[%s61] sm:$0x1]
    %v2048 = vlaneseq
    %v2049 = vshrl.u32 %v2048, 7
    %v2050 = vsub.s32 0, %v2049
    %v2051 = vrot.slane %v2046, %v2050
    %v2061 = vlaneseq
    %v2062 = vand.u32 %v2061, 127
    %v2063 = vlaneseq
    %v2064 = vshrl.u32 %v2063, 7
    %v2065 = vsub.s32 %v2062, %v2064
    %v2066 = vrot.slane %v2034, %v2065
    %v2067 = vadd.s32 %v2062, 4294967288
    %v2068 = vlaneseq
    %v2069 = vshrl.u32 %v2068, 7
    %v2070 = vsub.s32 %v2067, %v2069
    %v2071 = vrot.slane %v2035, %v2070
    %vm2072 = vcmask 130112
    %v2073 = vsel %vm2072, %v2071, %v2066
    %v2074 = vadd.s32 %v2062, 4294967280
    %v2075 = vlaneseq
    %v2076 = vshrl.u32 %v2075, 7
    %v2077 = vsub.s32 %v2074, %v2076
    %v2078 = vrot.slane %v2036, %v2077
    %vm2079 = vcmask 195712
    %v2080 = vsel %vm2079, %v2078, %v2073
    %v2081 = vadd.s32 %v2062, 4294967272
    %v2082 = vlaneseq
    %v2083 = vshrl.u32 %v2082, 7
    %v2084 = vsub.s32 %v2081, %v2083
    %v2085 = vrot.slane %v2037, %v2084
    %vm2086 = vcmask 261312
    %v2087 = vsel %vm2086, %v2085, %v2080
    %v2088 = vlaneseq
    %v2089 = vshrl.u32 %v2088, 7
    %v2090 = vsub.s32 %v2062, %v2089
    %v2091 = vrot.slane %v2038, %v2090
    %v2092 = vlaneseq
    %v2093 = vshrl.u32 %v2092, 7
    %v2094 = vsub.s32 %v2067, %v2093
    %v2095 = vrot.slane %v2039, %v2094
    %v2096 = vsel %vm2072, %v2095, %v2091
    %v2097 = vlaneseq
    %v2098 = vshrl.u32 %v2097, 7
    %v2099 = vsub.s32 %v2074, %v2098
    %v2100 = vrot.slane %v2040, %v2099
    %v2101 = vsel %vm2079, %v2100, %v2096
    %v2102 = vlaneseq
    %v2103 = vshrl.u32 %v2102, 7
    %v2104 = vsub.s32 %v2081, %v2103
    %v2105 = vrot.slane %v2041, %v2104
    %v2106 = vsel %vm2086, %v2105, %v2101
    %vm2107 = vcmask 1041409
    %v2108 = vsel %vm2107, %v2106, %v2087
    %v2109 = vsel %vm1002, %v2108, 0
    %2111 = vmatprep.subr.mxu0 0.0
    %2112 = vmatpush1.msra.mxu0 %v2042
    %2113 = vmatprep.subr.mxu0 0.0
    %2114 = vmatpush1.msra.mxu0 %v2043
    %2115 = vmatprep.subr.mxu0 0.0
    %2116 = vmatpush1.msra.mxu0 %v2044
    %2117 = vmatprep.subr.mxu0 0.0
    %2118 = vmatpush1.msra.mxu0 %v2045
    %2119 = vmatprep.subr.mxu0 0.0
    %2120 = vmatpush1.msra.mxu0 0.0
    %2121 = vmatprep.subr.mxu0 0.0
    %2122 = vmatpush1.msra.mxu0 0.0
    %2123 = vmatprep.subr.mxu0 0.0
    %2124 = vmatpush1.msra.mxu0 0.0
    %2125 = vmatprep.subr.mxu0 0.0
    %2126 = vmatpush1.msra.mxu0 0.0
    %2127 = vmatprep.subr.mxu0 0.0
    %2128 = vmatpush1.msra.mxu0 0.0
    %2129 = vmatprep.subr.mxu0 0.0
    %2130 = vmatpush1.msra.mxu0 0.0
    %2131 = vmatprep.subr.mxu0 0.0
    %2132 = vmatpush1.msra.mxu0 0.0
    %2133 = vmatprep.subr.mxu0 0.0
    %2134 = vmatpush1.msra.mxu0 0.0
    %2135 = vmatprep.subr.mxu0 0.0
    %2136 = vmatpush1.msra.mxu0 0.0
    %2137 = vmatprep.subr.mxu0 0.0
    %2138 = vmatpush1.msra.mxu0 0.0
    %2139 = vmatprep.subr.mxu0 0.0
    %2140 = vmatpush1.msra.mxu0 0.0
    %2141 = vmatprep.subr.mxu0 0.0
    %2142 = vmatpush1.msra.mxu0 0.0
    %2143 = vmatprep.subr.mxu0 0.0
    %2144 = vmatpush1.msra.mxu0 0.0
    %2145 = vmatprep.subr.mxu0 0.0
    %2146 = vmatpush1.msra.mxu0 0.0
    %2147 = vmatprep.subr.mxu0 0.0
    %2148 = vmatpush1.msra.mxu0 0.0
    %2149 = vmatprep.subr.mxu0 0.0
    %2150 = vmatpush1.msra.mxu0 0.0
    %2151 = vmatprep.subr.mxu0 0.0
    %2152 = vmatpush1.msra.mxu0 0.0
    %2153 = vmatprep.subr.mxu0 0.0
    %2154 = vmatpush1.msra.mxu0 0.0
    %2155 = vmatprep.subr.mxu0 0.0
    %2156 = vmatpush1.msra.mxu0 0.0
    %2157 = vmatprep.subr.mxu0 0.0
    %2158 = vmatpush1.msra.mxu0 0.0
    %2159 = vmatprep.subr.mxu0 0.0
    %2160 = vmatpush1.msra.mxu0 0.0
    %2161 = vmatprep.subr.mxu0 0.0
    %2162 = vmatpush1.msra.mxu0 0.0
    %2163 = vmatprep.subr.mxu0 0.0
    %2164 = vmatpush1.msra.mxu0 0.0
    %2165 = vmatprep.subr.mxu0 0.0
    %2166 = vmatpush1.msra.mxu0 0.0
    %2167 = vmatprep.subr.mxu0 0.0
    %2168 = vmatpush1.msra.mxu0 0.0
    %2169 = vmatprep.subr.mxu0 0.0
    %2170 = vmatpush1.msra.mxu0 0.0
    %2171 = vmatprep.subr.mxu0 0.0
    %2172 = vmatpush1.msra.mxu0 0.0
    %2173 = vmatprep.subr.mxu0 0.0
    %2174 = vmatpush1.msra.mxu0 0.0
    %2175 = vmatprep.mubr.f32.mxu0 0.0
    %2176 = vmatmul.mubr.f32.gmra.mrb[0].mxu0 %v2109
    %v2177 = vpop.f32.mrb[0].mxu0
    %v2178 = vadd.f32 %v2051, %v2177
    %v2179 = vpop.f32.mrb[0].mxu0
    %2180 = vdwg.mxu0
    %vm2181 = vcmask 254976
    %v2182 = vsel %vm2181, %v2178, -inf
    %2183 = vmax.xlane.f32.xlu0 %v2182
    %v2184 = vpop.xlane.xlu0 %2183
    %v2185 = vsub.f32 %v2178, %v2184
    %v2186 = vmul.f32 %v2185, 1.442695
    %v2187 = vpow.pop %v2186
    %v2188 = vsel %vm2181, %v2187, 0.0
    %2189 = vadd.xlane.f32.xlu0 %v2188
    %v2190 = vpop.xlane.xlu0 %2189
    %v2191 = vrcp.pop %v2190
    %v2192 = vmul.f32 %v2187, %v2191
    %v2193 = vlaneseq
    %v2194 = vshrl.u32 %v2193, 7
    %v2195 = vsub.s32 0, %v2194
    %v2196 = vrot.slane %v2192, %v2195
    %2198 = vbcast.lane.b32.xlu0 %v2196, 256
    %v2199 = vpop.permute.xlu0 %2198
    %s2201 = sor.u32 256, 8
    %2202 = vbcast.lane.b32.xlu0 %v2196, %s2201
    %v2203 = vpop.permute.xlu0 %2202
    %s2205 = sor.u32 256, 16
    %2206 = vbcast.lane.b32.xlu0 %v2196, %s2205
    %v2207 = vpop.permute.xlu0 %2206
    %s2209 = sor.u32 256, 24
    %2210 = vbcast.lane.b32.xlu0 %v2196, %s2209
    %v2211 = vpop.permute.xlu0 %2210
    %v2212 = vlaneseq
    %v2213 = vshrl.u32 %v2212, 7
    %v2214 = vsub.s32 1, %v2213
    %v2215 = vrot.slane %v2192, %v2214
    %2217 = vbcast.lane.b32.xlu0 %v2215, 256
    %v2218 = vpop.permute.xlu0 %2217
    %s2220 = sor.u32 256, 8
    %2221 = vbcast.lane.b32.xlu0 %v2215, %s2220
    %v2222 = vpop.permute.xlu0 %2221
    %s2224 = sor.u32 256, 16
    %2225 = vbcast.lane.b32.xlu0 %v2215, %s2224
    %v2226 = vpop.permute.xlu0 %2225
    %s2228 = sor.u32 256, 24
    %2229 = vbcast.lane.b32.xlu0 %v2215, %s2228
    %v2230 = vpop.permute.xlu0 %2229
    %v2231 = vmul.f32 %v2002, %v2199
    %v2232 = vmul.f32 %v2003, %v2203
    %v2233 = vmul.f32 %v2004, %v2207
    %v2234 = vmul.f32 %v2005, %v2211
    %v2235 = vmul.f32 %v2006, %v2218
    %v2236 = vmul.f32 %v2007, %v2222
    %v2237 = vmul.f32 %v2008, %v2226
    %v2238 = vmul.f32 %v2009, %v2230
    %v2239 = vsel %vm506, %v2231, 0.0
    %2240 = vadd.xlane.f32.xlu0 %v2239
    %v2241 = vpop.xlane.xlu0 %2240
    %v2242 = vsel %vm506, %v2232, 0.0
    %2243 = vadd.xlane.f32.xlu0 %v2242
    %v2244 = vpop.xlane.xlu0 %2243
    %v2245 = vsel %vm506, %v2233, 0.0
    %2246 = vadd.xlane.f32.xlu0 %v2245
    %v2247 = vpop.xlane.xlu0 %2246
    %v2248 = vsel %vm506, %v2234, 0.0
    %2249 = vadd.xlane.f32.xlu0 %v2248
    %v2250 = vpop.xlane.xlu0 %2249
    %v2251 = vsel %vm506, %v2235, 0.0
    %2252 = vadd.xlane.f32.xlu0 %v2251
    %v2253 = vpop.xlane.xlu0 %2252
    %v2254 = vsel %vm506, %v2236, 0.0
    %2255 = vadd.xlane.f32.xlu0 %v2254
    %v2256 = vpop.xlane.xlu0 %2255
    %v2257 = vsel %vm506, %v2237, 0.0
    %2258 = vadd.xlane.f32.xlu0 %v2257
    %v2259 = vpop.xlane.xlu0 %2258
    %v2260 = vsel %vm506, %v2238, 0.0
    %2261 = vadd.xlane.f32.xlu0 %v2260
    %v2262 = vpop.xlane.xlu0 %2261
    %v2263 = vld [vmem:[%s63] sm:$0xff]
    %v2264 = vld [vmem:[%s63 + $0x8] sm:$0xff]
    %v2265 = vld [vmem:[%s63 + $0x10] sm:$0xff]
    %v2266 = vld [vmem:[%s63 + $0x18] sm:$0xff]
    %v2267 = vld [vmem:[%s63 + $0x20] sm:$0xff]
    %v2268 = vld [vmem:[%s63 + $0x28] sm:$0xff]
    %v2269 = vld [vmem:[%s63 + $0x30] sm:$0xff]
    %v2270 = vld [vmem:[%s63 + $0x38] sm:$0xff]
    %v2271 = vld [vmem:[%s65] sm:$0x3]
    %v2273 = vlaneseq
    %v2274 = vshrl.u32 %v2273, 7
    %v2275 = vsub.s32 0, %v2274
    %v2276 = vrot.slane %v2271, %v2275
    %v2277 = vlaneseq
    %v2278 = vshrl.u32 %v2277, 7
    %v2279 = vsub.s32 1, %v2278
    %v2280 = vrot.slane %v2271, %v2279
    %v2291 = vlaneseq
    %v2292 = vshrl.u32 %v2291, 7
    %v2293 = vsub.s32 %v2062, %v2292
    %v2294 = vrot.slane %v2241, %v2293
    %v2295 = vlaneseq
    %v2296 = vshrl.u32 %v2295, 7
    %v2297 = vsub.s32 %v2067, %v2296
    %v2298 = vrot.slane %v2244, %v2297
    %v2299 = vsel %vm2072, %v2298, %v2294
    %v2300 = vlaneseq
    %v2301 = vshrl.u32 %v2300, 7
    %v2302 = vsub.s32 %v2074, %v2301
    %v2303 = vrot.slane %v2247, %v2302
    %v2304 = vsel %vm2079, %v2303, %v2299
    %v2305 = vlaneseq
    %v2306 = vshrl.u32 %v2305, 7
    %v2307 = vsub.s32 %v2081, %v2306
    %v2308 = vrot.slane %v2250, %v2307
    %v2309 = vsel %vm2086, %v2308, %v2304
    %v2310 = vlaneseq
    %v2311 = vshrl.u32 %v2310, 7
    %v2312 = vsub.s32 %v2062, %v2311
    %v2313 = vrot.slane %v2253, %v2312
    %v2314 = vlaneseq
    %v2315 = vshrl.u32 %v2314, 7
    %v2316 = vsub.s32 %v2067, %v2315
    %v2317 = vrot.slane %v2256, %v2316
    %v2318 = vsel %vm2072, %v2317, %v2313
    %v2319 = vlaneseq
    %v2320 = vshrl.u32 %v2319, 7
    %v2321 = vsub.s32 %v2074, %v2320
    %v2322 = vrot.slane %v2259, %v2321
    %v2323 = vsel %vm2079, %v2322, %v2318
    %v2324 = vlaneseq
    %v2325 = vshrl.u32 %v2324, 7
    %v2326 = vsub.s32 %v2081, %v2325
    %v2327 = vrot.slane %v2262, %v2326
    %v2328 = vsel %vm2086, %v2327, %v2323
    %v2329 = vsel %vm2107, %v2328, %v2309
    %v2330 = vsel %vm1002, %v2329, 0
    %2332 = vmatprep.subr.mxu0 %v2264
    %2333 = vmatpush1.msra.mxu0 %v2263
    %2334 = vmatprep.subr.mxu0 %v2266
    %2335 = vmatpush1.msra.mxu0 %v2265
    %2336 = vmatprep.subr.mxu0 %v2268
    %2337 = vmatpush1.msra.mxu0 %v2267
    %2338 = vmatprep.subr.mxu0 %v2270
    %2339 = vmatpush1.msra.mxu0 %v2269
    %2340 = vmatprep.subr.mxu0 0.0
    %2341 = vmatpush1.msra.mxu0 0.0
    %2342 = vmatprep.subr.mxu0 0.0
    %2343 = vmatpush1.msra.mxu0 0.0
    %2344 = vmatprep.subr.mxu0 0.0
    %2345 = vmatpush1.msra.mxu0 0.0
    %2346 = vmatprep.subr.mxu0 0.0
    %2347 = vmatpush1.msra.mxu0 0.0
    %2348 = vmatprep.subr.mxu0 0.0
    %2349 = vmatpush1.msra.mxu0 0.0
    %2350 = vmatprep.subr.mxu0 0.0
    %2351 = vmatpush1.msra.mxu0 0.0
    %2352 = vmatprep.subr.mxu0 0.0
    %2353 = vmatpush1.msra.mxu0 0.0
    %2354 = vmatprep.subr.mxu0 0.0
    %2355 = vmatpush1.msra.mxu0 0.0
    %2356 = vmatprep.subr.mxu0 0.0
    %2357 = vmatpush1.msra.mxu0 0.0
    %2358 = vmatprep.subr.mxu0 0.0
    %2359 = vmatpush1.msra.mxu0 0.0
    %2360 = vmatprep.subr.mxu0 0.0
    %2361 = vmatpush1.msra.mxu0 0.0
    %2362 = vmatprep.subr.mxu0 0.0
    %2363 = vmatpush1.msra.mxu0 0.0
    %2364 = vmatprep.subr.mxu0 0.0
    %2365 = vmatpush1.msra.mxu0 0.0
    %2366 = vmatprep.subr.mxu0 0.0
    %2367 = vmatpush1.msra.mxu0 0.0
    %2368 = vmatprep.subr.mxu0 0.0
    %2369 = vmatpush1.msra.mxu0 0.0
    %2370 = vmatprep.subr.mxu0 0.0
    %2371 = vmatpush1.msra.mxu0 0.0
    %2372 = vmatprep.subr.mxu0 0.0
    %2373 = vmatpush1.msra.mxu0 0.0
    %2374 = vmatprep.subr.mxu0 0.0
    %2375 = vmatpush1.msra.mxu0 0.0
    %2376 = vmatprep.subr.mxu0 0.0
    %2377 = vmatpush1.msra.mxu0 0.0
    %2378 = vmatprep.subr.mxu0 0.0
    %2379 = vmatpush1.msra.mxu0 0.0
    %2380 = vmatprep.subr.mxu0 0.0
    %2381 = vmatpush1.msra.mxu0 0.0
    %2382 = vmatprep.subr.mxu0 0.0
    %2383 = vmatpush1.msra.mxu0 0.0
    %2384 = vmatprep.subr.mxu0 0.0
    %2385 = vmatpush1.msra.mxu0 0.0
    %2386 = vmatprep.subr.mxu0 0.0
    %2387 = vmatpush1.msra.mxu0 0.0
    %2388 = vmatprep.subr.mxu0 0.0
    %2389 = vmatpush1.msra.mxu0 0.0
    %2390 = vmatprep.subr.mxu0 0.0
    %2391 = vmatpush1.msra.mxu0 0.0
    %2392 = vmatprep.subr.mxu0 0.0
    %2393 = vmatpush1.msra.mxu0 0.0
    %2394 = vmatprep.subr.mxu0 0.0
    %2395 = vmatpush1.msra.mxu0 0.0
    %2396 = vmatprep.mubr.f32.mxu0 0.0
    %2397 = vmatmul.mubr.f32.gmra.mrb[0].mxu0 %v2330
    %v2398 = vpop.f32.mrb[0].mxu0
    %v2399 = vadd.f32 %v2276, %v2398
    %v2400 = vpop.f32.mrb[0].mxu0
    %v2401 = vadd.f32 %v2280, %v2400
    %2402 = vdwg.mxu0
    %v2403 = vmax.f32 %v2399, 0.0
    %v2404 = vmax.f32 %v2401, 0.0
    %v2405 = vld [vmem:[%s67] sm:$0xff]
    %v2406 = vld [vmem:[%s67 + $0x8] sm:$0xff]
    %v2407 = vld [vmem:[%s67 + $0x10] sm:$0xff]
    %v2408 = vld [vmem:[%s67 + $0x18] sm:$0xff]
    %v2409 = vld [vmem:[%s67 + $0x20] sm:$0xff]
    %v2410 = vld [vmem:[%s67 + $0x28] sm:$0xff]
    %v2411 = vld [vmem:[%s67 + $0x30] sm:$0xff]
    %v2412 = vld [vmem:[%s67 + $0x38] sm:$0xff]
    %v2413 = vld [vmem:[%s67 + $0x40] sm:$0xff]
    %v2414 = vld [vmem:[%s67 + $0x48] sm:$0xff]
    %v2415 = vld [vmem:[%s67 + $0x50] sm:$0xff]
    %v2416 = vld [vmem:[%s67 + $0x58] sm:$0xff]
    %v2417 = vld [vmem:[%s67 + $0x60] sm:$0xff]
    %v2418 = vld [vmem:[%s67 + $0x68] sm:$0xff]
    %v2419 = vld [vmem:[%s67 + $0x70] sm:$0xff]
    %v2420 = vld [vmem:[%s67 + $0x78] sm:$0xff]
    %v2421 = vld [vmem:[%s67 + $0x80] sm:$0xff]
    %v2422 = vld [vmem:[%s67 + $0x88] sm:$0xff]
    %v2423 = vld [vmem:[%s67 + $0x90] sm:$0xff]
    %v2424 = vld [vmem:[%s67 + $0x98] sm:$0xff]
    %v2425 = vld [vmem:[%s67 + $0xa0] sm:$0xff]
    %v2426 = vld [vmem:[%s67 + $0xa8] sm:$0xff]
    %v2427 = vld [vmem:[%s67 + $0xb0] sm:$0xff]
    %v2428 = vld [vmem:[%s67 + $0xb8] sm:$0xff]
    %v2429 = vld [vmem:[%s67 + $0xc0] sm:$0xff]
    %v2430 = vld [vmem:[%s67 + $0xc8] sm:$0xff]
    %v2431 = vld [vmem:[%s67 + $0xd0] sm:$0xff]
    %v2432 = vld [vmem:[%s67 + $0xd8] sm:$0xff]
    %v2433 = vld [vmem:[%s67 + $0xe0] sm:$0xff]
    %v2434 = vld [vmem:[%s67 + $0xe8] sm:$0xff]
    %v2435 = vld [vmem:[%s67 + $0xf0] sm:$0xff]
    %v2436 = vld [vmem:[%s67 + $0xf8] sm:$0xff]
    %v2437 = vld [vmem:[%s69] sm:$0x1]
    %v2439 = vlaneseq
    %v2440 = vshrl.u32 %v2439, 7
    %v2441 = vsub.s32 0, %v2440
    %v2442 = vrot.slane %v2437, %v2441
    %2444 = vmatprep.subr.mxu0 0.0
    %2445 = vmatpush1.msra.mxu0 %v2405
    %2446 = vmatprep.subr.mxu0 0.0
    %2447 = vmatpush1.msra.mxu0 %v2406
    %2448 = vmatprep.subr.mxu0 0.0
    %2449 = vmatpush1.msra.mxu0 %v2407
    %2450 = vmatprep.subr.mxu0 0.0
    %2451 = vmatpush1.msra.mxu0 %v2408
    %2452 = vmatprep.subr.mxu0 0.0
    %2453 = vmatpush1.msra.mxu0 %v2409
    %2454 = vmatprep.subr.mxu0 0.0
    %2455 = vmatpush1.msra.mxu0 %v2410
    %2456 = vmatprep.subr.mxu0 0.0
    %2457 = vmatpush1.msra.mxu0 %v2411
    %2458 = vmatprep.subr.mxu0 0.0
    %2459 = vmatpush1.msra.mxu0 %v2412
    %2460 = vmatprep.subr.mxu0 0.0
    %2461 = vmatpush1.msra.mxu0 %v2413
    %2462 = vmatprep.subr.mxu0 0.0
    %2463 = vmatpush1.msra.mxu0 %v2414
    %2464 = vmatprep.subr.mxu0 0.0
    %2465 = vmatpush1.msra.mxu0 %v2415
    %2466 = vmatprep.subr.mxu0 0.0
    %2467 = vmatpush1.msra.mxu0 %v2416
    %2468 = vmatprep.subr.mxu0 0.0
    %2469 = vmatpush1.msra.mxu0 %v2417
    %2470 = vmatprep.subr.mxu0 0.0
    %2471 = vmatpush1.msra.mxu0 %v2418
    %2472 = vmatprep.subr.mxu0 0.0
    %2473 = vmatpush1.msra.mxu0 %v2419
    %2474 = vmatprep.subr.mxu0 0.0
    %2475 = vmatpush1.msra.mxu0 %v2420
    %2476 = vmatprep.subr.mxu0 0.0
    %2477 = vmatpush1.msra.mxu0 %v2421
    %2478 = vmatprep.subr.mxu0 0.0
    %2479 = vmatpush1.msra.mxu0 %v2422
    %2480 = vmatprep.subr.mxu0 0.0
    %2481 = vmatpush1.msra.mxu0 %v2423
    %2482 = vmatprep.subr.mxu0 0.0
    %2483 = vmatpush1.msra.mxu0 %v2424
    %2484 = vmatprep.subr.mxu0 0.0
    %2485 = vmatpush1.msra.mxu0 %v2425
    %2486 = vmatprep.subr.mxu0 0.0
    %2487 = vmatpush1.msra.mxu0 %v2426
    %2488 = vmatprep.subr.mxu0 0.0
    %2489 = vmatpush1.msra.mxu0 %v2427
    %2490 = vmatprep.subr.mxu0 0.0
    %2491 = vmatpush1.msra.mxu0 %v2428
    %2492 = vmatprep.subr.mxu0 0.0
    %2493 = vmatpush1.msra.mxu0 %v2429
    %2494 = vmatprep.subr.mxu0 0.0
    %2495 = vmatpush1.msra.mxu0 %v2430
    %2496 = vmatprep.subr.mxu0 0.0
    %2497 = vmatpush1.msra.mxu0 %v2431
    %2498 = vmatprep.subr.mxu0 0.0
    %2499 = vmatpush1.msra.mxu0 %v2432
    %2500 = vmatprep.subr.mxu0 0.0
    %2501 = vmatpush1.msra.mxu0 %v2433
    %2502 = vmatprep.subr.mxu0 0.0
    %2503 = vmatpush1.msra.mxu0 %v2434
    %2504 = vmatprep.subr.mxu0 0.0
    %2505 = vmatpush1.msra.mxu0 %v2435
    %2506 = vmatprep.subr.mxu0 0.0
    %2507 = vmatpush1.msra.mxu0 %v2436
    %2508 = vmatprep.mubr.f32.mxu0 %v2404
    %2509 = vmatmul.mubr.f32.gmra.mrb[0].mxu0 %v2403
    %v2510 = vpop.f32.mrb[0].mxu0
    %v2511 = vadd.f32 %v2442, %v2510
    %v2512 = vpop.f32.mrb[0].mxu0
    %2513 = vdwg.mxu0
    %vm2514 = vcmask 33792
    %2515 = vst.msk [vmem:[#allocation2] sm:$0x3] %vm2514, %v2511
    // Predicated region
    $region142: #{cnn_residual_attention.1} parent=1 // pred_check
      _
    $region143: #{cnn_residual_attention.1} parent=1 // pred_check_branch
      %2517 = sbr.rel (0) target = $region145
    $region144: #{cnn_residual_attention.1} parent=1 // pred_region
      %s2519 = ssub.s32 32, 32
      %2520 = vsyncadd [#allocation3], %s2519
      %s2522 = sshll.u32 [#allocation2], 4
      %s2523 = int_to_ptr.vmem [resolvable:$true] %s2522
      %2525 = dma.vmem_to_hbm [thread:$0]  %s2523, 32, %s71, [#allocation3]
    $region145: #{cnn_residual_attention.1} parent=1 // pred_fallthru
      _
    // Predicated region
    $region146: #{cnn_residual_attention.1} parent=1 // pred_check
      _
    $region147: #{cnn_residual_attention.1} parent=1 // pred_check_branch
      %2527 = sbr.rel (0) target = $region149
    $region148: #{cnn_residual_attention.1} parent=1 // pred_region
      %2528 = dma.done [#allocation3], 32
    $region149: #{cnn_residual_attention.1} parent=1 // pred_fallthru
      _
    %2529 = vsyncpa [#allocation3], 1

</llo_original>
